<compile_context>
chip_gen: v7x
topology: tpu7x:2x2x1
jax: 0.10.0
libtpu: 0.0.40
codegen_flags: <defaults>
</compile_context>

<pallas_src>
import functools

import jax
import jax.numpy as jnp
from jax.experimental import pallas as pl
from jax.experimental.pallas import tpu as pltpu

BN_EPS = 1e-5


# ---------------------------------------------------------------------------
# Fused BAM forward (Pallas)
# ---------------------------------------------------------------------------
def bam_forward(x, params, *, reduction=16, dilation=4):
    """x: (B, C, H, W) float32 -> (B, C, H, W) float32."""
    B, C, H, W = x.shape
    Cr = C // reduction
    dil = dilation
    WC = W * C           # lane width of x rows
    WCr = W * Cr         # lane width of conv-branch rows
    LPAD = -(-dil // 8) * 8          # sublane-aligned row pad (>= dil)
    assert dil <= LPAD

    # NCHW -> NHWC -> (B, H, W*C): free reshape of contiguous NHWC memory.
    # TODO(synk): if the surrounding network is NHWC these two transposes
    # (here and at the end) disappear entirely.
    x2 = jnp.transpose(x, (0, 2, 3, 1)).reshape(B, H, WC)

    # ---------------- wrapper-side weight preprocessing (tiny) -------------
    f32 = jnp.float32
    ones_row = jnp.ones((1, W), f32)

    # channel branch: fold GAP (1/HW) and the W-fold lane replication into
    # the FC weights so the kernel only does one sublane sum + lane reduces.
    fc1_eff = jnp.kron(ones_row, params["fc1_w"]) / float(H * W)      # (Cr, W*C)
    fc1_b = params["fc1_b"].reshape(Cr, 1)
    fc2_eff = jnp.kron(ones_row, params["fc2_w"].T)                   # (Cr, W*C)
    fc2_b_row = jnp.tile(params["fc2_b"], W).reshape(1, WC)

    # conv1 1x1 (C -> Cr), block-diagonal over the W column blocks.
    c1_blk = jnp.kron(jnp.eye(W, dtype=f32),
                      params["c1_w"].reshape(Cr, C).T)                # (W*C, W*Cr)
    c1_b_row = jnp.tile(params["c1_b"], W).reshape(1, WCr)

    # dilated 3x3 convs: one banded lane weight per kernel row iy.  The band
    # offset implements the +/-dil column shift; the eye() truncation at the
    # image border implements the zero padding -> no masks in the kernel.
    def banded(w):  # w: (Cr_out, Cr_in, 3, 3) OIHW
        mats = []
        for iy in range(3):
            m = jnp.zeros((WCr, WCr), f32)
            for ix in range(3):
                shift = jnp.eye(W, k=-(ix - 1) * dil, dtype=f32)      # scol=ocol+dx
                m = m + jnp.kron(shift, w[:, :, iy, ix].T)            # (ci, co) blocks
            mats.append(m)
        return jnp.stack(mats, axis=0)                                # (3, W*Cr, W*Cr)

    w2_band = banded(params["c2_w"])
    b2_row = jnp.tile(params["c2_b"], W).reshape(1, WCr)
    w3_band = banded(params["c3_w"])
    b3_row = jnp.tile(params["c3_b"], W).reshape(1, WCr)

    # conv4 (Cr -> 1) with eval-mode BatchNorm folded in; the weight also
    # broadcasts the scalar spatial map across all C lanes of each column.
    # TODO(synk): BatchNorm2d is folded in eval mode (running statistics);
    # training-mode batch statistics are not implemented.
    s = params["bn_gamma"] / jnp.sqrt(params["bn_var"] + BN_EPS)      # (1,)
    w4_col = (params["c4_w"].reshape(Cr, 1) * s[0])                   # (Cr, 1)
    w4_big = jnp.kron(jnp.eye(W, dtype=f32),
                      w4_col * jnp.ones((1, C), f32))                 # (W*Cr, W*C)
    b4 = (params["c4_b"] * s + params["bn_beta"]
          - params["bn_mean"] * s).reshape(1, 1)

    pad_rows = 2 * LPAD + H

    # ---------------- kernel ------------------------------------------------
    def kernel(x_ref, fc1_ref, fc1b_ref, fc2_ref, fc2b_ref,
               c1w_ref, c1b_ref, w2_ref, b2_ref, w3_ref, b3_ref,
               w4_ref, b4_ref, o_ref, pad_ref):
        xb = x_ref[0]                                          # (H, W*C) f32

        # ---- channel attention: GAP -> FC -> ReLU -> FC -> sigmoid -------
        rowsum = jnp.sum(xb, axis=0, keepdims=True)            # (1, W*C)
        h = jnp.maximum(
            jnp.sum(fc1_ref[...] * rowsum, axis=1, keepdims=True)
            + fc1b_ref[...], 0.0)                              # (Cr, 1)
        ca = jax.nn.sigmoid(
            jnp.sum(fc2_ref[...] * h, axis=0, keepdims=True)
            + fc2b_ref[...])                                   # (1, W*C)

        # ---- spatial attention --------------------------------------------
        # conv1 1x1 (f32 MXU, block-diagonal weight)
        t = jnp.dot(xb, c1w_ref[...],
                    preferred_element_type=jnp.float32) + c1b_ref[...]  # (H, W*Cr)

        # zero only the two border tiles of the row-pad slab; the interior is
        # fully overwritten by each dilated conv below.
        pad_ref[:LPAD, :] = jnp.zeros((LPAD, WCr), jnp.float32)
        pad_ref[LPAD + H:, :] = jnp.zeros((LPAD, WCr), jnp.float32)

        def dilated_3x3(vals, w_ref, b_ref):
            # row (dy) shifts via the zero-padded slab; column (dx) shifts and
            # border zeroing live inside the banded weights -> 3 matmuls.
            pad_ref[LPAD:LPAD + H, :] = vals
            acc = jnp.dot(vals, w_ref[1],
                          preferred_element_type=jnp.float32)            # dy = 0
            acc = acc + jnp.dot(pad_ref[LPAD - dil:LPAD - dil + H, :],
                                w_ref[0],
                                preferred_element_type=jnp.float32)      # dy = -dil
            acc = acc + jnp.dot(pad_ref[LPAD + dil:LPAD + dil + H, :],
                                w_ref[2],
                                preferred_element_type=jnp.float32)      # dy = +dil
            return acc + b_ref[...]

        t = dilated_3x3(t, w2_ref, b2_ref)                     # conv2
        t = dilated_3x3(t, w3_ref, b3_ref)                     # conv3

        # conv4 1x1 -> 1 channel, BN folded, broadcast across C lanes
        sa = jnp.dot(t, w4_ref[...],
                     preferred_element_type=jnp.float32) + b4_ref[...]   # (H, W*C)

        # ---- fused gate epilogue: x*sigmoid(ca+sa) + x = x*(1+gate) -------
        gate = jax.nn.sigmoid(ca + sa)                         # (H, W*C)
        o_ref[0] = (xb * (1.0 + gate)).astype(o_ref.dtype)

    def full(shape):
        return pl.BlockSpec(shape, lambda b: (0,) * len(shape))

    out = pl.pallas_call(
        kernel,
        out_shape=jax.ShapeDtypeStruct((B, H, WC), jnp.float32),
        grid_spec=pltpu.PrefetchScalarGridSpec(
            num_scalar_prefetch=0,
            grid=(B,),
            in_specs=[
                pl.BlockSpec((1, H, WC), lambda b: (b, 0, 0)),   # x
                full((Cr, WC)), full((Cr, 1)),                   # fc1
                full((Cr, WC)), full((1, WC)),                   # fc2
                full((WC, WCr)), full((1, WCr)),                 # conv1
                full((3, WCr, WCr)), full((1, WCr)),             # conv2 (banded)
                full((3, WCr, WCr)), full((1, WCr)),             # conv3 (banded)
                full((WCr, WC)), full((1, 1)),                   # conv4 + BN
            ],
            out_specs=pl.BlockSpec((1, H, WC), lambda b: (b, 0, 0)),
            scratch_shapes=[pltpu.VMEM((pad_rows, WCr), jnp.float32)],
        ),
        compiler_params=pltpu.CompilerParams(
            dimension_semantics=("parallel",)),        # v7x: one batch per TC
    )(x2, fc1_eff, fc1_b, fc2_eff, fc2_b_row,
      c1_blk, c1_b_row, w2_band, b2_row, w3_band, b3_row, w4_big, b4)

    return jnp.transpose(out.reshape(B, H, W, C), (0, 3, 1, 2))


# ---------------------------------------------------------------------------
# Deterministic parameters (shapes match the torch module, C=64, reduction=16)
# ---------------------------------------------------------------------------
def make_params(key, C, reduction):
    Cr = C // reduction
    ks = jax.random.split(key, 16)

    def uniform(k, shape, fan_in):
        bound = 1.0 / (fan_in ** 0.5)
        return jax.random.uniform(k, shape, jnp.float32, -bound, bound)

    return {
        "fc1_w": uniform(ks[0], (Cr, C), C),
        "fc1_b": uniform(ks[1], (Cr,), C),
        "fc2_w": uniform(ks[2], (C, Cr), Cr),
        "fc2_b": uniform(ks[3], (C,), Cr),
        "c1_w": uniform(ks[4], (Cr, C, 1, 1), C),
        "c1_b": uniform(ks[5], (Cr,), C),
        "c2_w": uniform(ks[6], (Cr, Cr, 3, 3), Cr * 9),
        "c2_b": uniform(ks[7], (Cr,), Cr * 9),
        "c3_w": uniform(ks[8], (Cr, Cr, 3, 3), Cr * 9),
        "c3_b": uniform(ks[9], (Cr,), Cr * 9),
        "c4_w": uniform(ks[10], (1, Cr, 1, 1), Cr),
        "c4_b": uniform(ks[11], (1,), Cr),
        # eval-mode BatchNorm2d(1) affine parameters / running statistics
        "bn_gamma": jax.random.uniform(ks[12], (1,), jnp.float32, 0.5, 1.5),
        "bn_beta": jax.random.uniform(ks[13], (1,), jnp.float32, -0.5, 0.5),
        "bn_mean": jax.random.uniform(ks[14], (1,), jnp.float32, -0.5, 0.5),
        "bn_var": jax.random.uniform(ks[15], (1,), jnp.float32, 0.5, 1.5),
    }


# ---------------------------------------------------------------------------
# Plain-JAX (XLA) reference of Bottleneck_Attention_Module.forward
# ---------------------------------------------------------------------------
def reference(x, p, *, dilation=4):
    hi = jax.lax.Precision.HIGHEST

    mean = jnp.mean(x, axis=(2, 3))                                    # (B, C)
    h = jax.nn.relu(jnp.dot(mean, p["fc1_w"].T, precision=hi) + p["fc1_b"])
    ca = jax.nn.sigmoid(jnp.dot(h, p["fc2_w"].T, precision=hi) + p["fc2_b"])

    def conv(z, w, b, dil, pad):
        y = jax.lax.conv_general_dilated(
            z, w, window_strides=(1, 1),
            padding=((pad, pad), (pad, pad)), rhs_dilation=(dil, dil),
            dimension_numbers=("NCHW", "OIHW", "NCHW"), precision=hi)
        return y + b[None, :, None, None]

    y2 = conv(x, p["c1_w"], p["c1_b"], 1, 0)
    y2 = conv(y2, p["c2_w"], p["c2_b"], dilation, dilation)
    y2 = conv(y2, p["c3_w"], p["c3_b"], dilation, dilation)
    y2 = conv(y2, p["c4_w"], p["c4_b"], 1, 0)
    s = p["bn_gamma"] / jnp.sqrt(p["bn_var"] + BN_EPS)
    y2 = (y2 * s[None, :, None, None]
          + (p["bn_beta"] - p["bn_mean"] * s)[None, :, None, None])

    gate = jax.nn.sigmoid(ca[:, :, None, None] + y2)    # sa broadcast over C
    return x * gate + x


if __name__ == "__main__":
    key = jax.random.PRNGKey(0)
    kp, kx = jax.random.split(key)

    B, C, H, W = 2, 64, 16, 16
    REDUCTION, DILATION = 16, 4

    params = make_params(kp, C, REDUCTION)
    x = jax.random.normal(kx, (B, C, H, W), jnp.float32)

    run = jax.jit(functools.partial(bam_forward,
                                    reduction=REDUCTION, dilation=DILATION))
    out = jax.block_until_ready(run(x, params))

    ref = reference(x, params, dilation=DILATION)
    assert out.shape == (B, C, H, W)
    assert bool(jnp.all(jnp.isfinite(out)))
    assert bool(jnp.allclose(out, ref, rtol=2e-2, atol=2e-2)), \
        float(jnp.max(jnp.abs(out - ref)))
    print("KERNEL_OK")
</pallas_src>

<mosaic_0001>
module attributes {stable_mosaic.version = 11 : i64} {
  func.func @kernel(%arg0: i32, %arg1: memref<1x16x1024xf32, #tpu.memory_space<vmem>>, %arg2: memref<4x1024xf32, #tpu.memory_space<vmem>>, %arg3: memref<4x1xf32, #tpu.memory_space<vmem>>, %arg4: memref<4x1024xf32, #tpu.memory_space<vmem>>, %arg5: memref<1x1024xf32, #tpu.memory_space<vmem>>, %arg6: memref<1024x64xf32, #tpu.memory_space<vmem>>, %arg7: memref<1x64xf32, #tpu.memory_space<vmem>>, %arg8: memref<3x64x64xf32, #tpu.memory_space<vmem>>, %arg9: memref<1x64xf32, #tpu.memory_space<vmem>>, %arg10: memref<3x64x64xf32, #tpu.memory_space<vmem>>, %arg11: memref<1x64xf32, #tpu.memory_space<vmem>>, %arg12: memref<64x1024xf32, #tpu.memory_space<vmem>>, %arg13: memref<1x1xf32, #tpu.memory_space<vmem>>, %arg14: memref<1x16x1024xf32, #tpu.memory_space<vmem>>, %arg15: memref<32x64xf32, #tpu.memory_space<vmem>>) attributes {dimension_semantics = [#tpu.dimension_semantics<parallel>], iteration_bounds = array<i64: 2>, scalar_prefetch = 0 : i64, scratch_operands = 1 : i64, tpu.core_type = #tpu.core_type<tc>, window_params = [{transform_indices = @transform_0, window_bounds = array<i64: 1, 16, 1024>}, {pipeline_mode = #tpu.pipeline_mode<synchronous>, transform_indices = @transform_1, window_bounds = array<i64: 4, 1024>}, {pipeline_mode = #tpu.pipeline_mode<synchronous>, transform_indices = @transform_2, window_bounds = array<i64: 4, 1>}, {pipeline_mode = #tpu.pipeline_mode<synchronous>, transform_indices = @transform_3, window_bounds = array<i64: 4, 1024>}, {pipeline_mode = #tpu.pipeline_mode<synchronous>, transform_indices = @transform_4, window_bounds = array<i64: 1, 1024>}, {pipeline_mode = #tpu.pipeline_mode<synchronous>, transform_indices = @transform_5, window_bounds = array<i64: 1024, 64>}, {pipeline_mode = #tpu.pipeline_mode<synchronous>, transform_indices = @transform_6, window_bounds = array<i64: 1, 64>}, {pipeline_mode = #tpu.pipeline_mode<synchronous>, transform_indices = @transform_7, window_bounds = array<i64: 3, 64, 64>}, {pipeline_mode = #tpu.pipeline_mode<synchronous>, transform_indices = @transform_8, window_bounds = array<i64: 1, 64>}, {pipeline_mode = #tpu.pipeline_mode<synchronous>, transform_indices = @transform_9, window_bounds = array<i64: 3, 64, 64>}, {pipeline_mode = #tpu.pipeline_mode<synchronous>, transform_indices = @transform_10, window_bounds = array<i64: 1, 64>}, {pipeline_mode = #tpu.pipeline_mode<synchronous>, transform_indices = @transform_11, window_bounds = array<i64: 64, 1024>}, {pipeline_mode = #tpu.pipeline_mode<synchronous>, transform_indices = @transform_12, window_bounds = array<i64: 1, 1>}, {transform_indices = @transform_13, window_bounds = array<i64: 1, 16, 1024>}]} {
    %c0 = arith.constant 0 : index
    %c0_0 = arith.constant 0 : index
    %c0_1 = arith.constant 0 : index
    %0 = vector.load %arg1[%c0, %c0_0, %c0_1] : memref<1x16x1024xf32, #tpu.memory_space<vmem>>, vector<1x16x1024xf32>
    %1 = vector.shape_cast %0 : vector<1x16x1024xf32> to vector<16x1024xf32>
    %cst = arith.constant dense<0.000000e+00> : vector<1024xf32>
    %2 = vector.multi_reduction <add>, %1, %cst [0] : vector<16x1024xf32> to vector<1024xf32>
    %3 = vector.shape_cast %2 : vector<1024xf32> to vector<1x1024xf32>
    %c0_2 = arith.constant 0 : index
    %c0_3 = arith.constant 0 : index
    %4 = vector.load %arg2[%c0_2, %c0_3] : memref<4x1024xf32, #tpu.memory_space<vmem>>, vector<4x1024xf32>
    %5 = vector.broadcast %3 : vector<1x1024xf32> to vector<4x1024xf32>
    %6 = arith.mulf %4, %5 : vector<4x1024xf32>
    %cst_4 = arith.constant dense<0.000000e+00> : vector<4xf32>
    %7 = vector.multi_reduction <add>, %6, %cst_4 [1] : vector<4x1024xf32> to vector<4xf32>
    %8 = vector.shape_cast %7 : vector<4xf32> to vector<4x1xf32>
    %c0_5 = arith.constant 0 : index
    %c0_6 = arith.constant 0 : index
    %9 = vector.load %arg3[%c0_5, %c0_6] : memref<4x1xf32, #tpu.memory_space<vmem>>, vector<4x1xf32>
    %10 = arith.addf %8, %9 : vector<4x1xf32>
    %cst_7 = arith.constant 0.000000e+00 : f32
    %11 = vector.broadcast %cst_7 : f32 to vector<4x1xf32>
    %12 = arith.maximumf %10, %11 : vector<4x1xf32>
    %c0_8 = arith.constant 0 : index
    %c0_9 = arith.constant 0 : index
    %13 = vector.load %arg4[%c0_8, %c0_9] : memref<4x1024xf32, #tpu.memory_space<vmem>>, vector<4x1024xf32>
    %14 = vector.broadcast %12 : vector<4x1xf32> to vector<4x1024xf32>
    %15 = arith.mulf %13, %14 : vector<4x1024xf32>
    %cst_10 = arith.constant dense<0.000000e+00> : vector<1024xf32>
    %16 = vector.multi_reduction <add>, %15, %cst_10 [0] : vector<4x1024xf32> to vector<1024xf32>
    %17 = vector.shape_cast %16 : vector<1024xf32> to vector<1x1024xf32>
    %c0_11 = arith.constant 0 : index
    %c0_12 = arith.constant 0 : index
    %18 = vector.load %arg5[%c0_11, %c0_12] : memref<1x1024xf32, #tpu.memory_space<vmem>>, vector<1x1024xf32>
    %19 = arith.addf %17, %18 : vector<1x1024xf32>
    %20 = arith.negf %19 : vector<1x1024xf32>
    %21 = math.exp %20 : vector<1x1024xf32>
    %cst_13 = arith.constant 1.000000e+00 : f32
    %22 = vector.broadcast %cst_13 : f32 to vector<1x1024xf32>
    %23 = arith.addf %22, %21 : vector<1x1024xf32>
    %24 = arith.divf %22, %23 : vector<1x1024xf32>
    %c0_14 = arith.constant 0 : index
    %c0_15 = arith.constant 0 : index
    %25 = vector.load %arg6[%c0_14, %c0_15] : memref<1024x64xf32, #tpu.memory_space<vmem>>, vector<1024x64xf32>
    %cst_16 = arith.constant dense<0.000000e+00> : vector<16x64xf32>
    %26 = tpu.matmul %1, %25, %cst_16 {dimension_numbers = #tpu.dot_dimension_numbers<[1], [0], [0], [1], [0, 0, 1, 1], [], []>} : vector<16x1024xf32>, vector<1024x64xf32>, vector<16x64xf32> -> vector<16x64xf32>
    %c0_17 = arith.constant 0 : index
    %c0_18 = arith.constant 0 : index
    %27 = vector.load %arg7[%c0_17, %c0_18] : memref<1x64xf32, #tpu.memory_space<vmem>>, vector<1x64xf32>
    %28 = vector.broadcast %27 : vector<1x64xf32> to vector<16x64xf32>
    %29 = arith.addf %26, %28 : vector<16x64xf32>
    %cst_19 = arith.constant 0.000000e+00 : f32
    %30 = vector.broadcast %cst_19 : f32 to vector<8x64xf32>
    %c0_20 = arith.constant 0 : index
    %c0_21 = arith.constant 0 : index
    %31 = vector.load %arg15[%c0_20, %c0_21] : memref<32x64xf32, #tpu.memory_space<vmem>>, vector<8x64xf32>
    tpu.vector_store %arg15[%c0_20, %c0_21], %30 {strides = array<i32>} : memref<32x64xf32, #tpu.memory_space<vmem>>, vector<8x64xf32>,
    %cst_22 = arith.constant 0.000000e+00 : f32
    %32 = vector.broadcast %cst_22 : f32 to vector<8x64xf32>
    %c24 = arith.constant 24 : index
    %c0_23 = arith.constant 0 : index
    %33 = vector.load %arg15[%c24, %c0_23] : memref<32x64xf32, #tpu.memory_space<vmem>>, vector<8x64xf32>
    tpu.vector_store %arg15[%c24, %c0_23], %32 {strides = array<i32>} : memref<32x64xf32, #tpu.memory_space<vmem>>, vector<8x64xf32>,
    %c8 = arith.constant 8 : index
    %c0_24 = arith.constant 0 : index
    %34 = vector.load %arg15[%c8, %c0_24] : memref<32x64xf32, #tpu.memory_space<vmem>>, vector<16x64xf32>
    tpu.vector_store %arg15[%c8, %c0_24], %29 {strides = array<i32>} : memref<32x64xf32, #tpu.memory_space<vmem>>, vector<16x64xf32>,
    %c1 = arith.constant 1 : index
    %c0_25 = arith.constant 0 : index
    %c0_26 = arith.constant 0 : index
    %35 = vector.load %arg8[%c1, %c0_25, %c0_26] : memref<3x64x64xf32, #tpu.memory_space<vmem>>, vector<1x64x64xf32>
    %36 = vector.shape_cast %35 : vector<1x64x64xf32> to vector<64x64xf32>
    %cst_27 = arith.constant dense<0.000000e+00> : vector<16x64xf32>
    %37 = tpu.matmul %29, %36, %cst_27 {dimension_numbers = #tpu.dot_dimension_numbers<[1], [0], [0], [1], [0, 0, 1, 1], [], []>} : vector<16x64xf32>, vector<64x64xf32>, vector<16x64xf32> -> vector<16x64xf32>
    %c4 = arith.constant 4 : index
    %c0_28 = arith.constant 0 : index
    %38 = vector.load %arg15[%c4, %c0_28] : memref<32x64xf32, #tpu.memory_space<vmem>>, vector<16x64xf32>
    %c0_29 = arith.constant 0 : index
    %c0_30 = arith.constant 0 : index
    %c0_31 = arith.constant 0 : index
    %39 = vector.load %arg8[%c0_29, %c0_30, %c0_31] : memref<3x64x64xf32, #tpu.memory_space<vmem>>, vector<1x64x64xf32>
    %40 = vector.shape_cast %39 : vector<1x64x64xf32> to vector<64x64xf32>
    %cst_32 = arith.constant dense<0.000000e+00> : vector<16x64xf32>
    %41 = tpu.matmul %38, %40, %cst_32 {dimension_numbers = #tpu.dot_dimension_numbers<[1], [0], [0], [1], [0, 0, 1, 1], [], []>} : vector<16x64xf32>, vector<64x64xf32>, vector<16x64xf32> -> vector<16x64xf32>
    %42 = arith.addf %37, %41 : vector<16x64xf32>
    %c12 = arith.constant 12 : index
    %c0_33 = arith.constant 0 : index
    %43 = vector.load %arg15[%c12, %c0_33] : memref<32x64xf32, #tpu.memory_space<vmem>>, vector<16x64xf32>
    %c2 = arith.constant 2 : index
    %c0_34 = arith.constant 0 : index
    %c0_35 = arith.constant 0 : index
    %44 = vector.load %arg8[%c2, %c0_34, %c0_35] : memref<3x64x64xf32, #tpu.memory_space<vmem>>, vector<1x64x64xf32>
    %45 = vector.shape_cast %44 : vector<1x64x64xf32> to vector<64x64xf32>
    %cst_36 = arith.constant dense<0.000000e+00> : vector<16x64xf32>
    %46 = tpu.matmul %43, %45, %cst_36 {dimension_numbers = #tpu.dot_dimension_numbers<[1], [0], [0], [1], [0, 0, 1, 1], [], []>} : vector<16x64xf32>, vector<64x64xf32>, vector<16x64xf32> -> vector<16x64xf32>
    %47 = arith.addf %42, %46 : vector<16x64xf32>
    %c0_37 = arith.constant 0 : index
    %c0_38 = arith.constant 0 : index
    %48 = vector.load %arg9[%c0_37, %c0_38] : memref<1x64xf32, #tpu.memory_space<vmem>>, vector<1x64xf32>
    %49 = vector.broadcast %48 : vector<1x64xf32> to vector<16x64xf32>
    %50 = arith.addf %47, %49 : vector<16x64xf32>
    %c8_39 = arith.constant 8 : index
    %c0_40 = arith.constant 0 : index
    %51 = vector.load %arg15[%c8_39, %c0_40] : memref<32x64xf32, #tpu.memory_space<vmem>>, vector<16x64xf32>
    tpu.vector_store %arg15[%c8_39, %c0_40], %50 {strides = array<i32>} : memref<32x64xf32, #tpu.memory_space<vmem>>, vector<16x64xf32>,
    %c1_41 = arith.constant 1 : index
    %c0_42 = arith.constant 0 : index
    %c0_43 = arith.constant 0 : index
    %52 = vector.load %arg10[%c1_41, %c0_42, %c0_43] : memref<3x64x64xf32, #tpu.memory_space<vmem>>, vector<1x64x64xf32>
    %53 = vector.shape_cast %52 : vector<1x64x64xf32> to vector<64x64xf32>
    %cst_44 = arith.constant dense<0.000000e+00> : vector<16x64xf32>
    %54 = tpu.matmul %50, %53, %cst_44 {dimension_numbers = #tpu.dot_dimension_numbers<[1], [0], [0], [1], [0, 0, 1, 1], [], []>} : vector<16x64xf32>, vector<64x64xf32>, vector<16x64xf32> -> vector<16x64xf32>
    %c4_45 = arith.constant 4 : index
    %c0_46 = arith.constant 0 : index
    %55 = vector.load %arg15[%c4_45, %c0_46] : memref<32x64xf32, #tpu.memory_space<vmem>>, vector<16x64xf32>
    %c0_47 = arith.constant 0 : index
    %c0_48 = arith.constant 0 : index
    %c0_49 = arith.constant 0 : index
    %56 = vector.load %arg10[%c0_47, %c0_48, %c0_49] : memref<3x64x64xf32, #tpu.memory_space<vmem>>, vector<1x64x64xf32>
    %57 = vector.shape_cast %56 : vector<1x64x64xf32> to vector<64x64xf32>
    %cst_50 = arith.constant dense<0.000000e+00> : vector<16x64xf32>
    %58 = tpu.matmul %55, %57, %cst_50 {dimension_numbers = #tpu.dot_dimension_numbers<[1], [0], [0], [1], [0, 0, 1, 1], [], []>} : vector<16x64xf32>, vector<64x64xf32>, vector<16x64xf32> -> vector<16x64xf32>
    %59 = arith.addf %54, %58 : vector<16x64xf32>
    %c12_51 = arith.constant 12 : index
    %c0_52 = arith.constant 0 : index
    %60 = vector.load %arg15[%c12_51, %c0_52] : memref<32x64xf32, #tpu.memory_space<vmem>>, vector<16x64xf32>
    %c2_53 = arith.constant 2 : index
    %c0_54 = arith.constant 0 : index
    %c0_55 = arith.constant 0 : index
    %61 = vector.load %arg10[%c2_53, %c0_54, %c0_55] : memref<3x64x64xf32, #tpu.memory_space<vmem>>, vector<1x64x64xf32>
    %62 = vector.shape_cast %61 : vector<1x64x64xf32> to vector<64x64xf32>
    %cst_56 = arith.constant dense<0.000000e+00> : vector<16x64xf32>
    %63 = tpu.matmul %60, %62, %cst_56 {dimension_numbers = #tpu.dot_dimension_numbers<[1], [0], [0], [1], [0, 0, 1, 1], [], []>} : vector<16x64xf32>, vector<64x64xf32>, vector<16x64xf32> -> vector<16x64xf32>
    %64 = arith.addf %59, %63 : vector<16x64xf32>
    %c0_57 = arith.constant 0 : index
    %c0_58 = arith.constant 0 : index
    %65 = vector.load %arg11[%c0_57, %c0_58] : memref<1x64xf32, #tpu.memory_space<vmem>>, vector<1x64xf32>
    %66 = vector.broadcast %65 : vector<1x64xf32> to vector<16x64xf32>
    %67 = arith.addf %64, %66 : vector<16x64xf32>
    %c0_59 = arith.constant 0 : index
    %c0_60 = arith.constant 0 : index
    %68 = vector.load %arg12[%c0_59, %c0_60] : memref<64x1024xf32, #tpu.memory_space<vmem>>, vector<64x1024xf32>
    %cst_61 = arith.constant dense<0.000000e+00> : vector<16x1024xf32>
    %69 = tpu.matmul %67, %68, %cst_61 {dimension_numbers = #tpu.dot_dimension_numbers<[1], [0], [0], [1], [0, 0, 1, 1], [], []>} : vector<16x64xf32>, vector<64x1024xf32>, vector<16x1024xf32> -> vector<16x1024xf32>
    %c0_62 = arith.constant 0 : index
    %c0_63 = arith.constant 0 : index
    %70 = vector.load %arg13[%c0_62, %c0_63] : memref<1x1xf32, #tpu.memory_space<vmem>>, vector<1x1xf32>
    %71 = vector.broadcast %70 : vector<1x1xf32> to vector<16x1024xf32>
    %72 = arith.addf %69, %71 : vector<16x1024xf32>
    %73 = vector.broadcast %24 : vector<1x1024xf32> to vector<16x1024xf32>
    %74 = arith.addf %73, %72 : vector<16x1024xf32>
    %75 = arith.negf %74 : vector<16x1024xf32>
    %76 = math.exp %75 : vector<16x1024xf32>
    %cst_64 = arith.constant 1.000000e+00 : f32
    %77 = vector.broadcast %cst_64 : f32 to vector<16x1024xf32>
    %78 = arith.addf %77, %76 : vector<16x1024xf32>
    %79 = arith.divf %77, %78 : vector<16x1024xf32>
    %cst_65 = arith.constant 1.000000e+00 : f32
    %80 = vector.broadcast %cst_65 : f32 to vector<16x1024xf32>
    %81 = arith.addf %80, %79 : vector<16x1024xf32>
    %82 = arith.mulf %1, %81 : vector<16x1024xf32>
    %c0_66 = arith.constant 0 : index
    %c0_67 = arith.constant 0 : index
    %c0_68 = arith.constant 0 : index
    %83 = vector.load %arg14[%c0_66, %c0_67, %c0_68] : memref<1x16x1024xf32, #tpu.memory_space<vmem>>, vector<1x16x1024xf32>
    %84 = vector.shape_cast %83 : vector<1x16x1024xf32> to vector<16x1024xf32>
    %85 = vector.shape_cast %82 : vector<16x1024xf32> to vector<1x16x1024xf32>
    tpu.vector_store %arg14[%c0_66, %c0_67, %c0_68], %85 {strides = array<i32>} : memref<1x16x1024xf32, #tpu.memory_space<vmem>>, vector<1x16x1024xf32>,
    return
  }
  func.func @transform_0(%arg0: i32) -> (i32, i32, i32) {
    %c0_i32 = arith.constant 0 : i32
    %c0_i32_0 = arith.constant 0 : i32
    %c0_i32_1 = arith.constant 0 : i32
    return %arg0, %c0_i32, %c0_i32_0 : i32, i32, i32
  }
  func.func @transform_1(%arg0: i32) -> (i32, i32) {
    %c0_i32 = arith.constant 0 : i32
    %c0_i32_0 = arith.constant 0 : i32
    %c0_i32_1 = arith.constant 0 : i32
    return %c0_i32, %c0_i32_0 : i32, i32
  }
  func.func @transform_2(%arg0: i32) -> (i32, i32) {
    %c0_i32 = arith.constant 0 : i32
    %c0_i32_0 = arith.constant 0 : i32
    %c0_i32_1 = arith.constant 0 : i32
    return %c0_i32, %c0_i32_0 : i32, i32
  }
  func.func @transform_3(%arg0: i32) -> (i32, i32) {
    %c0_i32 = arith.constant 0 : i32
    %c0_i32_0 = arith.constant 0 : i32
    %c0_i32_1 = arith.constant 0 : i32
    return %c0_i32, %c0_i32_0 : i32, i32
  }
  func.func @transform_4(%arg0: i32) -> (i32, i32) {
    %c0_i32 = arith.constant 0 : i32
    %c0_i32_0 = arith.constant 0 : i32
    %c0_i32_1 = arith.constant 0 : i32
    return %c0_i32, %c0_i32_0 : i32, i32
  }
  func.func @transform_5(%arg0: i32) -> (i32, i32) {
    %c0_i32 = arith.constant 0 : i32
    %c0_i32_0 = arith.constant 0 : i32
    %c0_i32_1 = arith.constant 0 : i32
    return %c0_i32, %c0_i32_0 : i32, i32
  }
  func.func @transform_6(%arg0: i32) -> (i32, i32) {
    %c0_i32 = arith.constant 0 : i32
    %c0_i32_0 = arith.constant 0 : i32
    %c0_i32_1 = arith.constant 0 : i32
    return %c0_i32, %c0_i32_0 : i32, i32
  }
  func.func @transform_7(%arg0: i32) -> (i32, i32, i32) {
    %c0_i32 = arith.constant 0 : i32
    %c0_i32_0 = arith.constant 0 : i32
    %c0_i32_1 = arith.constant 0 : i32
    %c0_i32_2 = arith.constant 0 : i32
    return %c0_i32, %c0_i32_0, %c0_i32_1 : i32, i32, i32
  }
  func.func @transform_8(%arg0: i32) -> (i32, i32) {
    %c0_i32 = arith.constant 0 : i32
    %c0_i32_0 = arith.constant 0 : i32
    %c0_i32_1 = arith.constant 0 : i32
    return %c0_i32, %c0_i32_0 : i32, i32
  }
  func.func @transform_9(%arg0: i32) -> (i32, i32, i32) {
    %c0_i32 = arith.constant 0 : i32
    %c0_i32_0 = arith.constant 0 : i32
    %c0_i32_1 = arith.constant 0 : i32
    %c0_i32_2 = arith.constant 0 : i32
    return %c0_i32, %c0_i32_0, %c0_i32_1 : i32, i32, i32
  }
  func.func @transform_10(%arg0: i32) -> (i32, i32) {
    %c0_i32 = arith.constant 0 : i32
    %c0_i32_0 = arith.constant 0 : i32
    %c0_i32_1 = arith.constant 0 : i32
    return %c0_i32, %c0_i32_0 : i32, i32
  }
  func.func @transform_11(%arg0: i32) -> (i32, i32) {
    %c0_i32 = arith.constant 0 : i32
    %c0_i32_0 = arith.constant 0 : i32
    %c0_i32_1 = arith.constant 0 : i32
    return %c0_i32, %c0_i32_0 : i32, i32
  }
  func.func @transform_12(%arg0: i32) -> (i32, i32) {
    %c0_i32 = arith.constant 0 : i32
    %c0_i32_0 = arith.constant 0 : i32
    %c0_i32_1 = arith.constant 0 : i32
    return %c0_i32, %c0_i32_0 : i32, i32
  }
  func.func @transform_13(%arg0: i32) -> (i32, i32, i32) {
    %c0_i32 = arith.constant 0 : i32
    %c0_i32_0 = arith.constant 0 : i32
    %c0_i32_1 = arith.constant 0 : i32
    return %arg0, %c0_i32, %c0_i32_0 : i32, i32, i32
  }
}

</mosaic_0001>

<llo_original>
// kernel: tile.23
$region0: #{tile.23}
  #allocation0 [shape = 's32[1]{0}', space=sflag, size = 0x4, scoped, tag = 'scoped memory for tile.23']
  %s0 = inlined_call_operand.vmem [shape: f32[64], index: 0, kind: input, shape index: {}]
  %s1 = inlined_call_operand.vmem [shape: f32[16,64], index: 1, kind: output, shape index: {}]
  // Predicated region
  $region2: #{tile.23} parent=0 // pred_check
    _
  $region3: #{tile.23} parent=0 // pred_check_branch
    %3 = sbr.rel (0) target = $region5
  $region4: #{tile.23} parent=0 // pred_region
    _
  $region5: #{tile.23} parent=0 // pred_fallthru
    _
  %v4 = vld [vmem:[%s0] ss:$0 sm:$0xff]
  %5 = vst [vmem:[%s1] sm:$0xff] %v4
  %s6 = scalar_lea.vmem %s1, 8
  %7 = vst [vmem:[%s6] sm:$0xff] %v4

// kernel: tile.24
$region0: #{tile.24}
  %s0 = inlined_call_operand.vmem [shape: f32[16,64], index: 0, kind: input, shape index: {}]
  %s1 = inlined_call_operand.vmem [shape: f32[1,1024], index: 1, kind: output, shape index: {}]
  $region1: #{tile.24} parent=0
    #allocation0 [shape = 'u8[32768]{0}', space=vmem, size = 0x8000, scoped, tag = 'scoped mem for output reshape']
    %v2 = vld [vmem:[%s0] ss:$2 sm:$0xff]
    %vm3 = vcmask 523264
    %4 = vst.msk [vmem:[#allocation0] ss:$8 sm:$0xf] %vm3, %v2
    %5 = vst.msk [vmem:[#allocation0] ss:$8 sm:$0xf0] %vm3, %v2
    %s6 = scalar_lea.vmem %s0, 1
    %v7 = vld [vmem:[%s6] ss:$2 sm:$0xff]
    %8 = vrot.lane.b32.xlu0 %v7, 64
    %v9 = vpop.permute.xlu0 %8
    %vm10 = vcmask 1048064
    %11 = vst.msk [vmem:[#allocation0] ss:$8 sm:$0xf] %vm10, %v9
    %12 = vst.msk [vmem:[#allocation0] ss:$8 sm:$0xf0] %vm10, %v9
    %s14 = sshllo.u32 0, 1
    %v16 = vld [vmem:[#allocation0] sm:%s14]
    %s17 = sshllo.u32 0, 1
    %18 = vst [vmem:[%s1] sm:%s17] %v16
    %s19 = scalar_lea.vmem [#allocation0], 8
    %v20 = vld [vmem:[%s19] sm:%s14]
    %s21 = sshllo.u32 0, 1
    %s22 = scalar_lea.vmem %s1, 1
    %23 = vst [vmem:[%s22] sm:%s21] %v20
    %s24 = scalar_lea.vmem [#allocation0], 16
    %v25 = vld [vmem:[%s24] sm:%s14]
    %s26 = sshllo.u32 0, 1
    %s27 = smul.addr 1, 2
    %s28 = scalar_lea.vmem %s1, %s27
    %29 = vst [vmem:[%s28] sm:%s26] %v25
    %s30 = scalar_lea.vmem [#allocation0], 24
    %v31 = vld [vmem:[%s30] sm:%s14]
    %s32 = sshllo.u32 0, 1
    %s33 = smul.addr 1, 3
    %s34 = scalar_lea.vmem %s1, %s33
    %35 = vst [vmem:[%s34] sm:%s32] %v31
    %s36 = scalar_lea.vmem [#allocation0], 32
    %v37 = vld [vmem:[%s36] sm:%s14]
    %s38 = sshllo.u32 0, 1
    %s39 = smul.addr 1, 4
    %s40 = scalar_lea.vmem %s1, %s39
    %41 = vst [vmem:[%s40] sm:%s38] %v37
    %s42 = scalar_lea.vmem [#allocation0], 40
    %v43 = vld [vmem:[%s42] sm:%s14]
    %s44 = sshllo.u32 0, 1
    %s45 = smul.addr 1, 5
    %s46 = scalar_lea.vmem %s1, %s45
    %47 = vst [vmem:[%s46] sm:%s44] %v43
    %s48 = scalar_lea.vmem [#allocation0], 48
    %v49 = vld [vmem:[%s48] sm:%s14]
    %s50 = sshllo.u32 0, 1
    %s51 = smul.addr 1, 6
    %s52 = scalar_lea.vmem %s1, %s51
    %53 = vst [vmem:[%s52] sm:%s50] %v49
    %s54 = scalar_lea.vmem [#allocation0], 56
    %v55 = vld [vmem:[%s54] sm:%s14]
    %s56 = sshllo.u32 0, 1
    %s57 = smul.addr 1, 7
    %s58 = scalar_lea.vmem %s1, %s57
    %59 = vst [vmem:[%s58] sm:%s56] %v55

// kernel: tile.29
$region0: #{tile.29}
  %s0 = inlined_call_operand.vmem [shape: f32[16,4], index: 0, kind: input, shape index: {}]
  %s1 = inlined_call_operand.vmem [shape: f32[1,64], index: 1, kind: output, shape index: {}]
  $region1: #{tile.29} parent=0
    #allocation0 [shape = 'u8[4096]{0}', space=vmem, size = 0x1000, scoped, tag = 'scoped mem for output reshape']
    %v2 = vld [vmem:[%s0] sm:$0x1]
    %vm3 = vcmask 31744
    %4 = vst.msk [vmem:[#allocation0] sm:$0x1] %vm3, %v2
    %s5 = scalar_lea.vmem %s0, 15
    %v6 = vld [vmem:[%s5] sm:$0x1]
    %7 = vrot.lane.b32.xlu0 %v6, 60
    %v8 = vpop.permute.xlu0 %7
    %vm9 = vcmask 523744
    %10 = vst.msk [vmem:[#allocation0] sm:$0x1] %vm9, %v8
    %s11 = scalar_lea.vmem %s0, 14
    %v12 = vld [vmem:[%s11] sm:$0x1]
    %13 = vrot.lane.b32.xlu0 %v12, 56
    %v14 = vpop.permute.xlu0 %13
    %vm15 = vcmask 490944
    %16 = vst.msk [vmem:[#allocation0] sm:$0x1] %vm15, %v14
    %s17 = scalar_lea.vmem %s0, 13
    %v18 = vld [vmem:[%s17] sm:$0x1]
    %19 = vrot.lane.b32.xlu0 %v18, 52
    %v20 = vpop.permute.xlu0 %19
    %vm21 = vcmask 458144
    %22 = vst.msk [vmem:[#allocation0] sm:$0x1] %vm21, %v20
    %s23 = scalar_lea.vmem %s0, 12
    %v24 = vld [vmem:[%s23] sm:$0x1]
    %25 = vrot.lane.b32.xlu0 %v24, 48
    %v26 = vpop.permute.xlu0 %25
    %vm27 = vcmask 425344
    %28 = vst.msk [vmem:[#allocation0] sm:$0x1] %vm27, %v26
    %s29 = scalar_lea.vmem %s0, 11
    %v30 = vld [vmem:[%s29] sm:$0x1]
    %31 = vrot.lane.b32.xlu0 %v30, 44
    %v32 = vpop.permute.xlu0 %31
    %vm33 = vcmask 392544
    %34 = vst.msk [vmem:[#allocation0] sm:$0x1] %vm33, %v32
    %s35 = scalar_lea.vmem %s0, 10
    %v36 = vld [vmem:[%s35] sm:$0x1]
    %37 = vrot.lane.b32.xlu0 %v36, 40
    %v38 = vpop.permute.xlu0 %37
    %vm39 = vcmask 359744
    %40 = vst.msk [vmem:[#allocation0] sm:$0x1] %vm39, %v38
    %s41 = scalar_lea.vmem %s0, 9
    %v42 = vld [vmem:[%s41] sm:$0x1]
    %43 = vrot.lane.b32.xlu0 %v42, 36
    %v44 = vpop.permute.xlu0 %43
    %vm45 = vcmask 326944
    %46 = vst.msk [vmem:[#allocation0] sm:$0x1] %vm45, %v44
    %s47 = scalar_lea.vmem %s0, 8
    %v48 = vld [vmem:[%s47] sm:$0x1]
    %49 = vrot.lane.b32.xlu0 %v48, 32
    %v50 = vpop.permute.xlu0 %49
    %vm51 = vcmask 294144
    %52 = vst.msk [vmem:[#allocation0] sm:$0x1] %vm51, %v50
    %s53 = scalar_lea.vmem %s0, 7
    %v54 = vld [vmem:[%s53] sm:$0x1]
    %55 = vrot.lane.b32.xlu0 %v54, 28
    %v56 = vpop.permute.xlu0 %55
    %vm57 = vcmask 261344
    %58 = vst.msk [vmem:[#allocation0] sm:$0x1] %vm57, %v56
    %s59 = scalar_lea.vmem %s0, 6
    %v60 = vld [vmem:[%s59] sm:$0x1]
    %61 = vrot.lane.b32.xlu0 %v60, 24
    %v62 = vpop.permute.xlu0 %61
    %vm63 = vcmask 228544
    %64 = vst.msk [vmem:[#allocation0] sm:$0x1] %vm63, %v62
    %s65 = scalar_lea.vmem %s0, 5
    %v66 = vld [vmem:[%s65] sm:$0x1]
    %67 = vrot.lane.b32.xlu0 %v66, 20
    %v68 = vpop.permute.xlu0 %67
    %vm69 = vcmask 195744
    %70 = vst.msk [vmem:[#allocation0] sm:$0x1] %vm69, %v68
    %s71 = scalar_lea.vmem %s0, 4
    %v72 = vld [vmem:[%s71] sm:$0x1]
    %73 = vrot.lane.b32.xlu0 %v72, 16
    %v74 = vpop.permute.xlu0 %73
    %vm75 = vcmask 162944
    %76 = vst.msk [vmem:[#allocation0] sm:$0x1] %vm75, %v74
    %s77 = scalar_lea.vmem %s0, 3
    %v78 = vld [vmem:[%s77] sm:$0x1]
    %79 = vrot.lane.b32.xlu0 %v78, 12
    %v80 = vpop.permute.xlu0 %79
    %vm81 = vcmask 130144
    %82 = vst.msk [vmem:[#allocation0] sm:$0x1] %vm81, %v80
    %s83 = scalar_lea.vmem %s0, 2
    %v84 = vld [vmem:[%s83] sm:$0x1]
    %85 = vrot.lane.b32.xlu0 %v84, 8
    %v86 = vpop.permute.xlu0 %85
    %vm87 = vcmask 97344
    %88 = vst.msk [vmem:[#allocation0] sm:$0x1] %vm87, %v86
    %s89 = scalar_lea.vmem %s0, 1
    %v90 = vld [vmem:[%s89] sm:$0x1]
    %91 = vrot.lane.b32.xlu0 %v90, 4
    %v92 = vpop.permute.xlu0 %91
    %vm93 = vcmask 64544
    %94 = vst.msk [vmem:[#allocation0] sm:$0x1] %vm93, %v92
    %s96 = sshllo.u32 0, 1
    %v98 = vld [vmem:[#allocation0] sm:%s96]
    %s99 = sshllo.u32 0, 1
    %100 = vst [vmem:[%s1] sm:%s99] %v98

// kernel: bam_forward.1
$region0: #{bam_forward.1}
  #allocation0 [shape = 'u32[]', space=smem, size = 0x4, offset = 0x4, fixed_abs, tag = 'smem constant byte address 0x4 - core index']
  #allocation1 [shape = 'u32[144,128]{1,0:T(1,128)}', space=vmem, size = 0x12000, scoped, tag = 'internal scratch']
  #allocation2 [shape = 'f32[32,64]{1,0:T(8,128)}', space=vmem, size = 0x4000, scoped, tag = 'scratch operand']
  #allocation3 [shape = 'f32[1,1]{1,0:T(1,128)S(1)}', space=vmem, size = 0x200, scoped, tag = 'scoped memory for bam_forward.1']
  %s0 = inlined_call_operand.vmem [shape: f32[2,16,1024], index: 0, kind: input, shape index: {}]
  %s1 = inlined_call_operand.vmem [shape: f32[4,1024], index: 1, kind: input, shape index: {}]
  %s2 = inlined_call_operand.vmem [shape: f32[4,1], index: 2, kind: input, shape index: {}]
  %s3 = inlined_call_operand.vmem [shape: f32[4,1024], index: 3, kind: input, shape index: {}]
  %s4 = inlined_call_operand.vmem [shape: f32[1,1024], index: 4, kind: input, shape index: {}]
  %s5 = inlined_call_operand.vmem [shape: f32[1024,64], index: 5, kind: input, shape index: {}]
  %s6 = inlined_call_operand.vmem [shape: f32[1,64], index: 6, kind: input, shape index: {}]
  %s7 = inlined_call_operand.vmem [shape: f32[3,64,64], index: 7, kind: input, shape index: {}]
  %s8 = inlined_call_operand.vmem [shape: f32[1,64], index: 8, kind: input, shape index: {}]
  %s9 = inlined_call_operand.vmem [shape: f32[3,64,64], index: 9, kind: input, shape index: {}]
  %s10 = inlined_call_operand.vmem [shape: f32[1,64], index: 10, kind: input, shape index: {}]
  %s11 = inlined_call_operand.vmem [shape: f32[64,1024], index: 11, kind: input, shape index: {}]
  %s12 = inlined_call_operand.<no memory space> [shape: f32[1,1], index: 12, kind: input, shape index: {}]
  %s13 = inlined_call_operand.vmem [shape: f32[2,16,1024], index: 13, kind: output, shape index: {}]
  %s14 = sld [smem:[#allocation0]]
  $region85: #{bam_forward.1} parent=0
    _
  %s16 = ssub.s32 1, %s14
  %s17 = scalar_select 0, %s16, %s14
  %v18 = vstv %s12
  %19 = vst [vmem:[#allocation3] sm:$0x1] %v18
  loop: start=0, step=1, limit=4
  $region2: #{bam_forward.1} parent=0 // loop_pre_header
    _
  $region3: #{bam_forward.1} parent=0 // loop_header
    %s21 = sphi 0, %s25
    %p22 = scmp.ge.s32.totalorder %s21, 4
    %s31 = sphi 0, %s33
    %s34 = sphi 0, %s31
    %s35 = sphi 0, %s34
    %s51 = sphi 0, %s35
    %s55 = sphi 0, %s55
    %s57 = sphi 0, %s55
    %s58 = sphi 0, %s57
    %s72 = sphi 0, %s58
    %s76 = sphi 0, %s76
    %s78 = sphi 0, %s76
    %s79 = sphi 0, %s78
    %s93 = sphi 0, %s79
    %s97 = sphi 0, %s97
    %s99 = sphi 0, %s97
    %s100 = sphi 0, %s99
    %s114 = sphi 0, %s100
    %s118 = sphi 0, %s118
    %s120 = sphi 0, %s118
    %s121 = sphi 0, %s120
    %s135 = sphi 0, %s121
    %s139 = sphi 0, %s139
    %s141 = sphi 0, %s139
    %s142 = sphi 0, %s141
    %s156 = sphi 0, %s142
    %s160 = sphi 0, %s160
    %s162 = sphi 0, %s160
    %s163 = sphi 0, %s162
    %s177 = sphi 0, %s163
    %s181 = sphi 0, %s181
    %s183 = sphi 0, %s181
    %s184 = sphi 0, %s183
    %s198 = sphi 0, %s184
    %s202 = sphi 0, %s202
    %s204 = sphi 0, %s202
    %s205 = sphi 0, %s204
    %s219 = sphi 0, %s205
    %s223 = sphi 0, %s223
    %s225 = sphi 0, %s223
    %s226 = sphi 0, %s225
    %s240 = sphi 0, %s226
    %s244 = sphi 0, %s244
    %s246 = sphi 0, %s244
    %s247 = sphi 0, %s246
    %s261 = sphi 0, %s247
    %s265 = sphi 0, %s265
    %s267 = sphi 0, %s265
    %s268 = sphi 0, %s267
    %s282 = sphi 0, %s268
    %s286 = sphi 0, %s286
    %s288 = sphi 0, %s286
    %s289 = sphi 0, %s288
    %s303 = sphi 0, %s289
    %s309 = sphi 0, %s311
    %s312 = sphi 0, %s309
    %s313 = sphi 0, %s312
    %s329 = sphi 0, %s313
  $region4: #{bam_forward.1} parent=0 // loop_header_branch
    %24 = sbr.rel (%p22) target = $region8
  $region5: #{bam_forward.1} parent=0 // loop_body
    %s26 = ssub.s32 %s21, 1
    %s27 = ssub.s32 %s21, 2
    %s28 = sadd.s32 %s21, 1
    %s29 = ssub.s32 %s21, %s28
    %p30 = scmp.eq.s32.totalorder %s29, 0
    %s32 = sadd.s32 %s31, 1
    %s33 = scalar_select %p30, %s31, %s32
    %p36 = pneg %p30
    %p37 = scmp.eq.s32.totalorder %s21, 1
    %p38 = por %p36, %p37
    %p39 = scmp.ne.s32.totalorder %s31, %s34
    %p40 = scmp.eq.s32.totalorder %s21, 0
    %p41 = por %p39, %p40
    %p42 = scmp.ne.s32.totalorder %s31, %s34
    %p43 = scmp.eq.s32.totalorder %s26, 1
    %p44 = por %p42, %p43
    %p45 = scmp.ne.s32.totalorder %s34, %s35
    %p46 = scmp.eq.s32.totalorder %s26, 0
    %p47 = por %p45, %p46
    %p48 = scmp.ne.s32.totalorder %s34, %s35
    %p49 = scmp.eq.s32.totalorder %s27, 1
    %p50 = por %p48, %p49
    %p52 = scmp.ne.s32.totalorder %s35, %s51
    %p53 = scmp.eq.s32.totalorder %s27, 0
    %p54 = por %p52, %p53
    %s56 = sadd.s32 %s55, 1
    %p59 = scmp.eq.s32.totalorder %s21, 1
    %p60 = scmp.ne.s32.totalorder %s55, %s57
    %p61 = scmp.eq.s32.totalorder %s21, 0
    %p62 = por %p60, %p61
    %p63 = scmp.ne.s32.totalorder %s55, %s57
    %p64 = scmp.eq.s32.totalorder %s26, 1
    %p65 = por %p63, %p64
    %p66 = scmp.ne.s32.totalorder %s57, %s58
    %p67 = scmp.eq.s32.totalorder %s26, 0
    %p68 = por %p66, %p67
    %p69 = scmp.ne.s32.totalorder %s57, %s58
    %p70 = scmp.eq.s32.totalorder %s27, 1
    %p71 = por %p69, %p70
    %p73 = scmp.ne.s32.totalorder %s58, %s72
    %p74 = scmp.eq.s32.totalorder %s27, 0
    %p75 = por %p73, %p74
    %s77 = sadd.s32 %s76, 1
    %p80 = scmp.eq.s32.totalorder %s21, 1
    %p81 = scmp.ne.s32.totalorder %s76, %s78
    %p82 = scmp.eq.s32.totalorder %s21, 0
    %p83 = por %p81, %p82
    %p84 = scmp.ne.s32.totalorder %s76, %s78
    %p85 = scmp.eq.s32.totalorder %s26, 1
    %p86 = por %p84, %p85
    %p87 = scmp.ne.s32.totalorder %s78, %s79
    %p88 = scmp.eq.s32.totalorder %s26, 0
    %p89 = por %p87, %p88
    %p90 = scmp.ne.s32.totalorder %s78, %s79
    %p91 = scmp.eq.s32.totalorder %s27, 1
    %p92 = por %p90, %p91
    %p94 = scmp.ne.s32.totalorder %s79, %s93
    %p95 = scmp.eq.s32.totalorder %s27, 0
    %p96 = por %p94, %p95
    %s98 = sadd.s32 %s97, 1
    %p101 = scmp.eq.s32.totalorder %s21, 1
    %p102 = scmp.ne.s32.totalorder %s97, %s99
    %p103 = scmp.eq.s32.totalorder %s21, 0
    %p104 = por %p102, %p103
    %p105 = scmp.ne.s32.totalorder %s97, %s99
    %p106 = scmp.eq.s32.totalorder %s26, 1
    %p107 = por %p105, %p106
    %p108 = scmp.ne.s32.totalorder %s99, %s100
    %p109 = scmp.eq.s32.totalorder %s26, 0
    %p110 = por %p108, %p109
    %p111 = scmp.ne.s32.totalorder %s99, %s100
    %p112 = scmp.eq.s32.totalorder %s27, 1
    %p113 = por %p111, %p112
    %p115 = scmp.ne.s32.totalorder %s100, %s114
    %p116 = scmp.eq.s32.totalorder %s27, 0
    %p117 = por %p115, %p116
    %s119 = sadd.s32 %s118, 1
    %p122 = scmp.eq.s32.totalorder %s21, 1
    %p123 = scmp.ne.s32.totalorder %s118, %s120
    %p124 = scmp.eq.s32.totalorder %s21, 0
    %p125 = por %p123, %p124
    %p126 = scmp.ne.s32.totalorder %s118, %s120
    %p127 = scmp.eq.s32.totalorder %s26, 1
    %p128 = por %p126, %p127
    %p129 = scmp.ne.s32.totalorder %s120, %s121
    %p130 = scmp.eq.s32.totalorder %s26, 0
    %p131 = por %p129, %p130
    %p132 = scmp.ne.s32.totalorder %s120, %s121
    %p133 = scmp.eq.s32.totalorder %s27, 1
    %p134 = por %p132, %p133
    %p136 = scmp.ne.s32.totalorder %s121, %s135
    %p137 = scmp.eq.s32.totalorder %s27, 0
    %p138 = por %p136, %p137
    %s140 = sadd.s32 %s139, 1
    %p143 = scmp.eq.s32.totalorder %s21, 1
    %p144 = scmp.ne.s32.totalorder %s139, %s141
    %p145 = scmp.eq.s32.totalorder %s21, 0
    %p146 = por %p144, %p145
    %p147 = scmp.ne.s32.totalorder %s139, %s141
    %p148 = scmp.eq.s32.totalorder %s26, 1
    %p149 = por %p147, %p148
    %p150 = scmp.ne.s32.totalorder %s141, %s142
    %p151 = scmp.eq.s32.totalorder %s26, 0
    %p152 = por %p150, %p151
    %p153 = scmp.ne.s32.totalorder %s141, %s142
    %p154 = scmp.eq.s32.totalorder %s27, 1
    %p155 = por %p153, %p154
    %p157 = scmp.ne.s32.totalorder %s142, %s156
    %p158 = scmp.eq.s32.totalorder %s27, 0
    %p159 = por %p157, %p158
    %s161 = sadd.s32 %s160, 1
    %p164 = scmp.eq.s32.totalorder %s21, 1
    %p165 = scmp.ne.s32.totalorder %s160, %s162
    %p166 = scmp.eq.s32.totalorder %s21, 0
    %p167 = por %p165, %p166
    %p168 = scmp.ne.s32.totalorder %s160, %s162
    %p169 = scmp.eq.s32.totalorder %s26, 1
    %p170 = por %p168, %p169
    %p171 = scmp.ne.s32.totalorder %s162, %s163
    %p172 = scmp.eq.s32.totalorder %s26, 0
    %p173 = por %p171, %p172
    %p174 = scmp.ne.s32.totalorder %s162, %s163
    %p175 = scmp.eq.s32.totalorder %s27, 1
    %p176 = por %p174, %p175
    %p178 = scmp.ne.s32.totalorder %s163, %s177
    %p179 = scmp.eq.s32.totalorder %s27, 0
    %p180 = por %p178, %p179
    %s182 = sadd.s32 %s181, 1
    %p185 = scmp.eq.s32.totalorder %s21, 1
    %p186 = scmp.ne.s32.totalorder %s181, %s183
    %p187 = scmp.eq.s32.totalorder %s21, 0
    %p188 = por %p186, %p187
    %p189 = scmp.ne.s32.totalorder %s181, %s183
    %p190 = scmp.eq.s32.totalorder %s26, 1
    %p191 = por %p189, %p190
    %p192 = scmp.ne.s32.totalorder %s183, %s184
    %p193 = scmp.eq.s32.totalorder %s26, 0
    %p194 = por %p192, %p193
    %p195 = scmp.ne.s32.totalorder %s183, %s184
    %p196 = scmp.eq.s32.totalorder %s27, 1
    %p197 = por %p195, %p196
    %p199 = scmp.ne.s32.totalorder %s184, %s198
    %p200 = scmp.eq.s32.totalorder %s27, 0
    %p201 = por %p199, %p200
    %s203 = sadd.s32 %s202, 1
    %p206 = scmp.eq.s32.totalorder %s21, 1
    %p207 = scmp.ne.s32.totalorder %s202, %s204
    %p208 = scmp.eq.s32.totalorder %s21, 0
    %p209 = por %p207, %p208
    %p210 = scmp.ne.s32.totalorder %s202, %s204
    %p211 = scmp.eq.s32.totalorder %s26, 1
    %p212 = por %p210, %p211
    %p213 = scmp.ne.s32.totalorder %s204, %s205
    %p214 = scmp.eq.s32.totalorder %s26, 0
    %p215 = por %p213, %p214
    %p216 = scmp.ne.s32.totalorder %s204, %s205
    %p217 = scmp.eq.s32.totalorder %s27, 1
    %p218 = por %p216, %p217
    %p220 = scmp.ne.s32.totalorder %s205, %s219
    %p221 = scmp.eq.s32.totalorder %s27, 0
    %p222 = por %p220, %p221
    %s224 = sadd.s32 %s223, 1
    %p227 = scmp.eq.s32.totalorder %s21, 1
    %p228 = scmp.ne.s32.totalorder %s223, %s225
    %p229 = scmp.eq.s32.totalorder %s21, 0
    %p230 = por %p228, %p229
    %p231 = scmp.ne.s32.totalorder %s223, %s225
    %p232 = scmp.eq.s32.totalorder %s26, 1
    %p233 = por %p231, %p232
    %p234 = scmp.ne.s32.totalorder %s225, %s226
    %p235 = scmp.eq.s32.totalorder %s26, 0
    %p236 = por %p234, %p235
    %p237 = scmp.ne.s32.totalorder %s225, %s226
    %p238 = scmp.eq.s32.totalorder %s27, 1
    %p239 = por %p237, %p238
    %p241 = scmp.ne.s32.totalorder %s226, %s240
    %p242 = scmp.eq.s32.totalorder %s27, 0
    %p243 = por %p241, %p242
    %s245 = sadd.s32 %s244, 1
    %p248 = scmp.eq.s32.totalorder %s21, 1
    %p249 = scmp.ne.s32.totalorder %s244, %s246
    %p250 = scmp.eq.s32.totalorder %s21, 0
    %p251 = por %p249, %p250
    %p252 = scmp.ne.s32.totalorder %s244, %s246
    %p253 = scmp.eq.s32.totalorder %s26, 1
    %p254 = por %p252, %p253
    %p255 = scmp.ne.s32.totalorder %s246, %s247
    %p256 = scmp.eq.s32.totalorder %s26, 0
    %p257 = por %p255, %p256
    %p258 = scmp.ne.s32.totalorder %s246, %s247
    %p259 = scmp.eq.s32.totalorder %s27, 1
    %p260 = por %p258, %p259
    %p262 = scmp.ne.s32.totalorder %s247, %s261
    %p263 = scmp.eq.s32.totalorder %s27, 0
    %p264 = por %p262, %p263
    %s266 = sadd.s32 %s265, 1
    %p269 = scmp.eq.s32.totalorder %s21, 1
    %p270 = scmp.ne.s32.totalorder %s265, %s267
    %p271 = scmp.eq.s32.totalorder %s21, 0
    %p272 = por %p270, %p271
    %p273 = scmp.ne.s32.totalorder %s265, %s267
    %p274 = scmp.eq.s32.totalorder %s26, 1
    %p275 = por %p273, %p274
    %p276 = scmp.ne.s32.totalorder %s267, %s268
    %p277 = scmp.eq.s32.totalorder %s26, 0
    %p278 = por %p276, %p277
    %p279 = scmp.ne.s32.totalorder %s267, %s268
    %p280 = scmp.eq.s32.totalorder %s27, 1
    %p281 = por %p279, %p280
    %p283 = scmp.ne.s32.totalorder %s268, %s282
    %p284 = scmp.eq.s32.totalorder %s27, 0
    %p285 = por %p283, %p284
    %s287 = sadd.s32 %s286, 1
    %p290 = scmp.eq.s32.totalorder %s21, 1
    %p291 = scmp.ne.s32.totalorder %s286, %s288
    %p292 = scmp.eq.s32.totalorder %s21, 0
    %p293 = por %p291, %p292
    %p294 = scmp.ne.s32.totalorder %s286, %s288
    %p295 = scmp.eq.s32.totalorder %s26, 1
    %p296 = por %p294, %p295
    %p297 = scmp.ne.s32.totalorder %s288, %s289
    %p298 = scmp.eq.s32.totalorder %s26, 0
    %p299 = por %p297, %p298
    %p300 = scmp.ne.s32.totalorder %s288, %s289
    %p301 = scmp.eq.s32.totalorder %s27, 1
    %p302 = por %p300, %p301
    %p304 = scmp.ne.s32.totalorder %s289, %s303
    %p305 = scmp.eq.s32.totalorder %s27, 0
    %p306 = por %p304, %p305
    %s307 = ssub.s32 %s21, %s28
    %p308 = scmp.eq.s32.totalorder %s307, 0
    %s310 = sadd.s32 %s309, 1
    %s311 = scalar_select %p308, %s309, %s310
    %p314 = pneg %p308
    %p315 = scmp.eq.s32.totalorder %s21, 1
    %p316 = por %p314, %p315
    %p317 = scmp.ne.s32.totalorder %s309, %s312
    %p318 = scmp.eq.s32.totalorder %s21, 0
    %p319 = por %p317, %p318
    %p320 = scmp.ne.s32.totalorder %s309, %s312
    %p321 = scmp.eq.s32.totalorder %s26, 1
    %p322 = por %p320, %p321
    %p323 = scmp.ne.s32.totalorder %s312, %s313
    %p324 = scmp.eq.s32.totalorder %s26, 0
    %p325 = por %p323, %p324
    %p326 = scmp.ne.s32.totalorder %s312, %s313
    %p327 = scmp.eq.s32.totalorder %s27, 1
    %p328 = por %p326, %p327
    %p330 = scmp.ne.s32.totalorder %s313, %s329
    %p331 = scmp.eq.s32.totalorder %s27, 0
    %p332 = por %p330, %p331
    %p333 = scmp.le.s32.totalorder 1, %s21
    %p334 = scmp.lt.s32.totalorder %s21, 3
    %p335 = pnand %p333, %p334
    %p336 = pneg %p335
    // Predicated region
    $region9: #{bam_forward.1} parent=5 // pred_check
      _
    $region10: #{bam_forward.1} parent=5 // pred_check_branch
      %338 = sbr.rel (%p335) target = $region12
    $region11: #{bam_forward.1} parent=5 // pred_region
      %s339 = ssub.s32 %s21, 1
      // Predicated region
      $region13: #{bam_forward.1} parent=11 // pred_check
        %p340 = pneg %p68
      $region14: #{bam_forward.1} parent=11 // pred_check_branch
        %342 = sbr.rel (%p340) target = $region16
      $region15: #{bam_forward.1} parent=11 // pred_region
        _
      $region16: #{bam_forward.1} parent=11 // pred_fallthru
        _
      // Predicated region
      $region17: #{bam_forward.1} parent=11 // pred_check
        %p343 = pneg %p89
      $region18: #{bam_forward.1} parent=11 // pred_check_branch
        %345 = sbr.rel (%p343) target = $region20
      $region19: #{bam_forward.1} parent=11 // pred_region
        _
      $region20: #{bam_forward.1} parent=11 // pred_fallthru
        _
      // Predicated region
      $region21: #{bam_forward.1} parent=11 // pred_check
        %p346 = pneg %p110
      $region22: #{bam_forward.1} parent=11 // pred_check_branch
        %348 = sbr.rel (%p346) target = $region24
      $region23: #{bam_forward.1} parent=11 // pred_region
        _
      $region24: #{bam_forward.1} parent=11 // pred_fallthru
        _
      // Predicated region
      $region25: #{bam_forward.1} parent=11 // pred_check
        %p349 = pneg %p131
      $region26: #{bam_forward.1} parent=11 // pred_check_branch
        %351 = sbr.rel (%p349) target = $region28
      $region27: #{bam_forward.1} parent=11 // pred_region
        _
      $region28: #{bam_forward.1} parent=11 // pred_fallthru
        _
      // Predicated region
      $region29: #{bam_forward.1} parent=11 // pred_check
        %p352 = pneg %p152
      $region30: #{bam_forward.1} parent=11 // pred_check_branch
        %354 = sbr.rel (%p352) target = $region32
      $region31: #{bam_forward.1} parent=11 // pred_region
        _
      $region32: #{bam_forward.1} parent=11 // pred_fallthru
        _
      // Predicated region
      $region33: #{bam_forward.1} parent=11 // pred_check
        %p355 = pneg %p173
      $region34: #{bam_forward.1} parent=11 // pred_check_branch
        %357 = sbr.rel (%p355) target = $region36
      $region35: #{bam_forward.1} parent=11 // pred_region
        _
      $region36: #{bam_forward.1} parent=11 // pred_fallthru
        _
      // Predicated region
      $region37: #{bam_forward.1} parent=11 // pred_check
        %p358 = pneg %p194
      $region38: #{bam_forward.1} parent=11 // pred_check_branch
        %360 = sbr.rel (%p358) target = $region40
      $region39: #{bam_forward.1} parent=11 // pred_region
        _
      $region40: #{bam_forward.1} parent=11 // pred_fallthru
        _
      // Predicated region
      $region41: #{bam_forward.1} parent=11 // pred_check
        %p361 = pneg %p215
      $region42: #{bam_forward.1} parent=11 // pred_check_branch
        %363 = sbr.rel (%p361) target = $region44
      $region43: #{bam_forward.1} parent=11 // pred_region
        _
      $region44: #{bam_forward.1} parent=11 // pred_fallthru
        _
      // Predicated region
      $region45: #{bam_forward.1} parent=11 // pred_check
        %p364 = pneg %p236
      $region46: #{bam_forward.1} parent=11 // pred_check_branch
        %366 = sbr.rel (%p364) target = $region48
      $region47: #{bam_forward.1} parent=11 // pred_region
        _
      $region48: #{bam_forward.1} parent=11 // pred_fallthru
        _
      // Predicated region
      $region49: #{bam_forward.1} parent=11 // pred_check
        %p367 = pneg %p257
      $region50: #{bam_forward.1} parent=11 // pred_check_branch
        %369 = sbr.rel (%p367) target = $region52
      $region51: #{bam_forward.1} parent=11 // pred_region
        _
      $region52: #{bam_forward.1} parent=11 // pred_fallthru
        _
      // Predicated region
      $region53: #{bam_forward.1} parent=11 // pred_check
        %p370 = pneg %p278
      $region54: #{bam_forward.1} parent=11 // pred_check_branch
        %372 = sbr.rel (%p370) target = $region56
      $region55: #{bam_forward.1} parent=11 // pred_region
        _
      $region56: #{bam_forward.1} parent=11 // pred_fallthru
        _
      // Predicated region
      $region57: #{bam_forward.1} parent=11 // pred_check
        %p373 = pneg %p299
      $region58: #{bam_forward.1} parent=11 // pred_check_branch
        %375 = sbr.rel (%p373) target = $region60
      $region59: #{bam_forward.1} parent=11 // pred_region
        _
      $region60: #{bam_forward.1} parent=11 // pred_fallthru
        _
    $region12: #{bam_forward.1} parent=5 // pred_fallthru
      _
    %p376 = scmp.lt.s32.totalorder %s21, 2
    // Predicated region
    $region61: #{bam_forward.1} parent=5 // pred_check
      %p377 = pneg %p376
    $region62: #{bam_forward.1} parent=5 // pred_check_branch
      %379 = sbr.rel (%p377) target = $region64
    $region63: #{bam_forward.1} parent=5 // pred_region
      // Predicated region
      $region65: #{bam_forward.1} parent=63 // pred_check
        %p380 = pneg %p41
      $region66: #{bam_forward.1} parent=63 // pred_check_branch
        %382 = sbr.rel (%p380) target = $region68
      $region67: #{bam_forward.1} parent=63 // pred_region
        %p383 = scmp.lt.s32.totalorder %s21, 1
        %s384 = scalar_select %p383, %s21, 1
        %s385 = smul.addr %s384, 16
        %s386 = smul.addr %s385, 8
        %s387 = scalar_lea.vmem %s0, %s386
      $region68: #{bam_forward.1} parent=63 // pred_fallthru
        _
    $region64: #{bam_forward.1} parent=5 // pred_fallthru
      _
    %p388 = scmp.le.s32.totalorder 1, %s21
    %p389 = scmp.lt.s32.totalorder %s21, 3
    %p390 = pnand %p388, %p389
    %p391 = pneg %p390
    // Predicated region
    $region69: #{bam_forward.1} parent=5 // pred_check
      _
    $region70: #{bam_forward.1} parent=5 // pred_check_branch
      %393 = sbr.rel (%p390) target = $region72
    $region71: #{bam_forward.1} parent=5 // pred_region
      %s394 = ssub.s32 %s21, 1
      %p395 = scmp.lt.s32.totalorder %s26, 1
      %s396 = scalar_select %p395, %s26, 1
      %s397 = smul.addr %s396, 16
      %s398 = smul.addr %s397, 8
      %s399 = scalar_lea.vmem %s0, %s398
      %p400 = pneg %p47
      %p401 = pneg %p44
      %p402 = pneg %p68
      %p403 = pneg %p65
      %p404 = pneg %p89
      %p405 = pneg %p86
      %p406 = pneg %p110
      %p407 = pneg %p107
      %p408 = pneg %p131
      %p409 = pneg %p128
      %p410 = pneg %p152
      %p411 = pneg %p149
      %p412 = pneg %p173
      %p413 = pneg %p170
      %p414 = pneg %p194
      %p415 = pneg %p191
      %p416 = pneg %p215
      %p417 = pneg %p212
      %p418 = pneg %p236
      %p419 = pneg %p233
      %p420 = pneg %p257
      %p421 = pneg %p254
      %p422 = pneg %p278
      %p423 = pneg %p275
      %p424 = pneg %p299
      %p425 = pneg %p296
      %p426 = pneg %p325
      %p427 = pneg %p322
      %p428 = scmp.lt.s32.totalorder %s26, 1
      %s429 = scalar_select %p428, %s26, 1
      %s430 = smul.addr %s429, 16
      %s431 = smul.addr %s430, 8
      %s432 = scalar_lea.vmem %s13, %s431
      %p433 = scmp.lt.s32.totalorder %s26, 1
      %s434 = scalar_select %p433, %s26, 1
      %s435 = smul.addr %s434, 16
      %s436 = smul.addr %s435, 8
      %s437 = scalar_lea.vmem %s0, %s436
      %p438 = scmp.lt.s32.totalorder %s26, 1
      %s439 = scalar_select %p438, %s26, 1
      %s440 = smul.addr %s439, 16
      %s441 = smul.addr %s440, 8
      %s442 = scalar_lea.vmem %s13, %s441
      %v443 = vld [vmem:[%s437] sm:$0xff]
      %v444 = vld [vmem:[%s437 + $0x8] sm:$0xff]
      %v445 = vld [vmem:[%s437 + $0x10] sm:$0xff]
      %v446 = vld [vmem:[%s437 + $0x18] sm:$0xff]
      %v447 = vld [vmem:[%s437 + $0x20] sm:$0xff]
      %v448 = vld [vmem:[%s437 + $0x28] sm:$0xff]
      %v449 = vld [vmem:[%s437 + $0x30] sm:$0xff]
      %v450 = vld [vmem:[%s437 + $0x38] sm:$0xff]
      %v451 = vld [vmem:[%s437 + $0x40] sm:$0xff]
      %v452 = vld [vmem:[%s437 + $0x48] sm:$0xff]
      %v453 = vld [vmem:[%s437 + $0x50] sm:$0xff]
      %v454 = vld [vmem:[%s437 + $0x58] sm:$0xff]
      %v455 = vld [vmem:[%s437 + $0x60] sm:$0xff]
      %v456 = vld [vmem:[%s437 + $0x68] sm:$0xff]
      %v457 = vld [vmem:[%s437 + $0x70] sm:$0xff]
      %v458 = vld [vmem:[%s437 + $0x78] sm:$0xff]
      %v459 = vadd.f32 %v443, %v451
      %v460 = vrot.slane %v459, 4
      %v461 = vadd.f32 %v459, %v460
      %v462 = vrot.slane %v461, 2
      %v463 = vadd.f32 %v461, %v462
      %v464 = vrot.slane %v463, 1
      %v465 = vadd.f32 %v463, %v464
      %v466 = vadd.f32 %v444, %v452
      %v467 = vrot.slane %v466, 4
      %v468 = vadd.f32 %v466, %v467
      %v469 = vrot.slane %v468, 2
      %v470 = vadd.f32 %v468, %v469
      %v471 = vrot.slane %v470, 1
      %v472 = vadd.f32 %v470, %v471
      %v473 = vadd.f32 %v445, %v453
      %v474 = vrot.slane %v473, 4
      %v475 = vadd.f32 %v473, %v474
      %v476 = vrot.slane %v475, 2
      %v477 = vadd.f32 %v475, %v476
      %v478 = vrot.slane %v477, 1
      %v479 = vadd.f32 %v477, %v478
      %v480 = vadd.f32 %v446, %v454
      %v481 = vrot.slane %v480, 4
      %v482 = vadd.f32 %v480, %v481
      %v483 = vrot.slane %v482, 2
      %v484 = vadd.f32 %v482, %v483
      %v485 = vrot.slane %v484, 1
      %v486 = vadd.f32 %v484, %v485
      %v487 = vadd.f32 %v447, %v455
      %v488 = vrot.slane %v487, 4
      %v489 = vadd.f32 %v487, %v488
      %v490 = vrot.slane %v489, 2
      %v491 = vadd.f32 %v489, %v490
      %v492 = vrot.slane %v491, 1
      %v493 = vadd.f32 %v491, %v492
      %v494 = vadd.f32 %v448, %v456
      %v495 = vrot.slane %v494, 4
      %v496 = vadd.f32 %v494, %v495
      %v497 = vrot.slane %v496, 2
      %v498 = vadd.f32 %v496, %v497
      %v499 = vrot.slane %v498, 1
      %v500 = vadd.f32 %v498, %v499
      %v501 = vadd.f32 %v449, %v457
      %v502 = vrot.slane %v501, 4
      %v503 = vadd.f32 %v501, %v502
      %v504 = vrot.slane %v503, 2
      %v505 = vadd.f32 %v503, %v504
      %v506 = vrot.slane %v505, 1
      %v507 = vadd.f32 %v505, %v506
      %v508 = vadd.f32 %v450, %v458
      %v509 = vrot.slane %v508, 4
      %v510 = vadd.f32 %v508, %v509
      %v511 = vrot.slane %v510, 2
      %v512 = vadd.f32 %v510, %v511
      %v513 = vrot.slane %v512, 1
      %v514 = vadd.f32 %v512, %v513
      %v515 = vld [vmem:[%s1] sm:$0xff]
      %v516 = vld [vmem:[%s1 + $0x8] sm:$0xff]
      %v517 = vld [vmem:[%s1 + $0x10] sm:$0xff]
      %v518 = vld [vmem:[%s1 + $0x18] sm:$0xff]
      %v527 = vcombine.low %v465, %v472
      %v528 = vcombine.low %v479, %v486
      %v529 = vcombine.low %v493, %v500
      %v530 = vcombine.low %v507, %v514
      %v535 = vmul.f32 %v515, %v527
      %v536 = vmul.f32 %v516, %v528
      %v537 = vmul.f32 %v517, %v529
      %v538 = vmul.f32 %v518, %v530
      %v543 = vcombine.high %v535, %v535
      %v544 = vcombine.high %v536, %v536
      %v545 = vcombine.high %v537, %v537
      %v546 = vcombine.high %v538, %v538
      %vm551 = vcmask 1043456
      %v552 = vsel %vm551, %v535, 0.0
      %v553 = vsel %vm551, %v543, 0.0
      %v554 = vadd.f32 %v552, %v553
      %v555 = vsel %vm551, %v536, 0.0
      %v556 = vadd.f32 %v554, %v555
      %v557 = vsel %vm551, %v544, 0.0
      %v558 = vadd.f32 %v556, %v557
      %v559 = vsel %vm551, %v537, 0.0
      %v560 = vadd.f32 %v558, %v559
      %v561 = vsel %vm551, %v545, 0.0
      %v562 = vadd.f32 %v560, %v561
      %v563 = vsel %vm551, %v538, 0.0
      %v564 = vadd.f32 %v562, %v563
      %v565 = vsel %vm551, %v546, 0.0
      %v566 = vadd.f32 %v564, %v565
      %567 = vadd.xlane.f32.xlu0 %v566
      %v568 = vpop.xlane.xlu0 %567
      %v569 = vld [vmem:[%s2] sm:$0xf]
      %v570 = vadd.f32 %v568, %v569
      %v571 = vmax.f32 %v570, 0.0
      %v572 = vld [vmem:[%s3] sm:$0xff]
      %v573 = vld [vmem:[%s3 + $0x8] sm:$0xff]
      %v574 = vld [vmem:[%s3 + $0x10] sm:$0xff]
      %v575 = vld [vmem:[%s3 + $0x18] sm:$0xff]
      %577 = vset.pattern.permute.xlu0 0
      %578 = vperm.xlu0 %577, %v571
      %v579 = vpop.permute.xlu0 %578
      %v581 = vunpack.c.l.s4 839922192
      %v582 = vunpack.c.0.s8 %v581
      %v583 = vlaneseq
      %v584 = vshrl.u32 %v583, 7
      %v585 = vsub.s32 %v582, %v584
      %v586 = vrot.slane %v579, %v585
      %v588 = vmul.f32 %v572, %v586
      %v589 = vmul.f32 %v573, %v586
      %v590 = vmul.f32 %v574, %v586
      %v591 = vmul.f32 %v575, %v586
      %v596 = vcombine.high %v588, %v588
      %v597 = vcombine.high %v589, %v589
      %v598 = vcombine.high %v590, %v590
      %v599 = vcombine.high %v591, %v591
      %v604 = vsel %vm551, %v588, 0.0
      %v605 = vrot.slane %v604, 4
      %v606 = vadd.f32 %v604, %v605
      %v607 = vrot.slane %v606, 2
      %v608 = vadd.f32 %v606, %v607
      %v609 = vrot.slane %v608, 1
      %v610 = vadd.f32 %v608, %v609
      %v611 = vsel %vm551, %v596, 0.0
      %v612 = vrot.slane %v611, 4
      %v613 = vadd.f32 %v611, %v612
      %v614 = vrot.slane %v613, 2
      %v615 = vadd.f32 %v613, %v614
      %v616 = vrot.slane %v615, 1
      %v617 = vadd.f32 %v615, %v616
      %v618 = vsel %vm551, %v589, 0.0
      %v619 = vrot.slane %v618, 4
      %v620 = vadd.f32 %v618, %v619
      %v621 = vrot.slane %v620, 2
      %v622 = vadd.f32 %v620, %v621
      %v623 = vrot.slane %v622, 1
      %v624 = vadd.f32 %v622, %v623
      %v625 = vsel %vm551, %v597, 0.0
      %v626 = vrot.slane %v625, 4
      %v627 = vadd.f32 %v625, %v626
      %v628 = vrot.slane %v627, 2
      %v629 = vadd.f32 %v627, %v628
      %v630 = vrot.slane %v629, 1
      %v631 = vadd.f32 %v629, %v630
      %v632 = vsel %vm551, %v590, 0.0
      %v633 = vrot.slane %v632, 4
      %v634 = vadd.f32 %v632, %v633
      %v635 = vrot.slane %v634, 2
      %v636 = vadd.f32 %v634, %v635
      %v637 = vrot.slane %v636, 1
      %v638 = vadd.f32 %v636, %v637
      %v639 = vsel %vm551, %v598, 0.0
      %v640 = vrot.slane %v639, 4
      %v641 = vadd.f32 %v639, %v640
      %v642 = vrot.slane %v641, 2
      %v643 = vadd.f32 %v641, %v642
      %v644 = vrot.slane %v643, 1
      %v645 = vadd.f32 %v643, %v644
      %v646 = vsel %vm551, %v591, 0.0
      %v647 = vrot.slane %v646, 4
      %v648 = vadd.f32 %v646, %v647
      %v649 = vrot.slane %v648, 2
      %v650 = vadd.f32 %v648, %v649
      %v651 = vrot.slane %v650, 1
      %v652 = vadd.f32 %v650, %v651
      %v653 = vsel %vm551, %v599, 0.0
      %v654 = vrot.slane %v653, 4
      %v655 = vadd.f32 %v653, %v654
      %v656 = vrot.slane %v655, 2
      %v657 = vadd.f32 %v655, %v656
      %v658 = vrot.slane %v657, 1
      %v659 = vadd.f32 %v657, %v658
      %v660 = vld [vmem:[%s4] sm:$0xff]
      %v662 = vlaneseq
      %v663 = vshrl.u32 %v662, 7
      %v664 = vsub.s32 0, %v663
      %v665 = vrot.slane %v660, %v664
      %v666 = vlaneseq
      %v667 = vshrl.u32 %v666, 7
      %v668 = vsub.s32 1, %v667
      %v669 = vrot.slane %v660, %v668
      %v670 = vlaneseq
      %v671 = vshrl.u32 %v670, 7
      %v672 = vsub.s32 2, %v671
      %v673 = vrot.slane %v660, %v672
      %v674 = vlaneseq
      %v675 = vshrl.u32 %v674, 7
      %v676 = vsub.s32 3, %v675
      %v677 = vrot.slane %v660, %v676
      %v678 = vlaneseq
      %v679 = vshrl.u32 %v678, 7
      %v680 = vsub.s32 4, %v679
      %v681 = vrot.slane %v660, %v680
      %v682 = vlaneseq
      %v683 = vshrl.u32 %v682, 7
      %v684 = vsub.s32 5, %v683
      %v685 = vrot.slane %v660, %v684
      %v686 = vlaneseq
      %v687 = vshrl.u32 %v686, 7
      %v688 = vsub.s32 6, %v687
      %v689 = vrot.slane %v660, %v688
      %v690 = vlaneseq
      %v691 = vshrl.u32 %v690, 7
      %v692 = vsub.s32 7, %v691
      %v693 = vrot.slane %v660, %v692
      %v702 = vadd.f32 %v610, %v665
      %v703 = vadd.f32 %v617, %v669
      %v704 = vadd.f32 %v624, %v673
      %v705 = vadd.f32 %v631, %v677
      %v706 = vadd.f32 %v638, %v681
      %v707 = vadd.f32 %v645, %v685
      %v708 = vadd.f32 %v652, %v689
      %v709 = vadd.f32 %v659, %v693
      %v710 = vxor.u32 %v702, 2147483648
      %v711 = vxor.u32 %v703, 2147483648
      %v712 = vxor.u32 %v704, 2147483648
      %v713 = vxor.u32 %v705, 2147483648
      %v714 = vxor.u32 %v706, 2147483648
      %v715 = vxor.u32 %v707, 2147483648
      %v716 = vxor.u32 %v708, 2147483648
      %v717 = vxor.u32 %v709, 2147483648
      %v718 = vmul.f32 %v710, 1.442695
      %v719 = vpow.pop %v718
      %v720 = vmul.f32 %v711, 1.442695
      %v721 = vpow.pop %v720
      %v722 = vmul.f32 %v712, 1.442695
      %v723 = vpow.pop %v722
      %v724 = vmul.f32 %v713, 1.442695
      %v725 = vpow.pop %v724
      %v726 = vmul.f32 %v714, 1.442695
      %v727 = vpow.pop %v726
      %v728 = vmul.f32 %v715, 1.442695
      %v729 = vpow.pop %v728
      %v730 = vmul.f32 %v716, 1.442695
      %v731 = vpow.pop %v730
      %v732 = vmul.f32 %v717, 1.442695
      %v733 = vpow.pop %v732
      %v734 = vadd.f32 %v719, 1.0
      %v735 = vadd.f32 %v721, 1.0
      %v736 = vadd.f32 %v723, 1.0
      %v737 = vadd.f32 %v725, 1.0
      %v738 = vadd.f32 %v727, 1.0
      %v739 = vadd.f32 %v729, 1.0
      %v740 = vadd.f32 %v731, 1.0
      %v741 = vadd.f32 %v733, 1.0
      %v742 = vrcp.pop %v734
      %v743 = vmul.f32 1.0, %v742
      %v744 = vrcp.pop %v735
      %v745 = vmul.f32 1.0, %v744
      %v746 = vrcp.pop %v736
      %v747 = vmul.f32 1.0, %v746
      %v748 = vrcp.pop %v737
      %v749 = vmul.f32 1.0, %v748
      %v750 = vrcp.pop %v738
      %v751 = vmul.f32 1.0, %v750
      %v752 = vrcp.pop %v739
      %v753 = vmul.f32 1.0, %v752
      %v754 = vrcp.pop %v740
      %v755 = vmul.f32 1.0, %v754
      %v756 = vrcp.pop %v741
      %v757 = vmul.f32 1.0, %v756
      %v758 = vld [vmem:[%s5] sm:$0xff]
      %v759 = vld [vmem:[%s5 + $0x8] sm:$0xff]
      %v760 = vld [vmem:[%s5 + $0x10] sm:$0xff]
      %v761 = vld [vmem:[%s5 + $0x18] sm:$0xff]
      %v762 = vld [vmem:[%s5 + $0x20] sm:$0xff]
      %v763 = vld [vmem:[%s5 + $0x28] sm:$0xff]
      %v764 = vld [vmem:[%s5 + $0x30] sm:$0xff]
      %v765 = vld [vmem:[%s5 + $0x38] sm:$0xff]
      %v766 = vld [vmem:[%s5 + $0x40] sm:$0xff]
      %v767 = vld [vmem:[%s5 + $0x48] sm:$0xff]
      %v768 = vld [vmem:[%s5 + $0x50] sm:$0xff]
      %v769 = vld [vmem:[%s5 + $0x58] sm:$0xff]
      %v770 = vld [vmem:[%s5 + $0x60] sm:$0xff]
      %v771 = vld [vmem:[%s5 + $0x68] sm:$0xff]
      %v772 = vld [vmem:[%s5 + $0x70] sm:$0xff]
      %v773 = vld [vmem:[%s5 + $0x78] sm:$0xff]
      %v774 = vld [vmem:[%s5 + $0x80] sm:$0xff]
      %v775 = vld [vmem:[%s5 + $0x88] sm:$0xff]
      %v776 = vld [vmem:[%s5 + $0x90] sm:$0xff]
      %v777 = vld [vmem:[%s5 + $0x98] sm:$0xff]
      %v778 = vld [vmem:[%s5 + $0xa0] sm:$0xff]
      %v779 = vld [vmem:[%s5 + $0xa8] sm:$0xff]
      %v780 = vld [vmem:[%s5 + $0xb0] sm:$0xff]
      %v781 = vld [vmem:[%s5 + $0xb8] sm:$0xff]
      %v782 = vld [vmem:[%s5 + $0xc0] sm:$0xff]
      %v783 = vld [vmem:[%s5 + $0xc8] sm:$0xff]
      %v784 = vld [vmem:[%s5 + $0xd0] sm:$0xff]
      %v785 = vld [vmem:[%s5 + $0xd8] sm:$0xff]
      %v786 = vld [vmem:[%s5 + $0xe0] sm:$0xff]
      %v787 = vld [vmem:[%s5 + $0xe8] sm:$0xff]
      %v788 = vld [vmem:[%s5 + $0xf0] sm:$0xff]
      %v789 = vld [vmem:[%s5 + $0xf8] sm:$0xff]
      %v790 = vld [vmem:[%s5 + $0x100] sm:$0xff]
      %v791 = vld [vmem:[%s5 + $0x108] sm:$0xff]
      %v792 = vld [vmem:[%s5 + $0x110] sm:$0xff]
      %v793 = vld [vmem:[%s5 + $0x118] sm:$0xff]
      %v794 = vld [vmem:[%s5 + $0x120] sm:$0xff]
      %v795 = vld [vmem:[%s5 + $0x128] sm:$0xff]
      %v796 = vld [vmem:[%s5 + $0x130] sm:$0xff]
      %v797 = vld [vmem:[%s5 + $0x138] sm:$0xff]
      %v798 = vld [vmem:[%s5 + $0x140] sm:$0xff]
      %v799 = vld [vmem:[%s5 + $0x148] sm:$0xff]
      %v800 = vld [vmem:[%s5 + $0x150] sm:$0xff]
      %v801 = vld [vmem:[%s5 + $0x158] sm:$0xff]
      %v802 = vld [vmem:[%s5 + $0x160] sm:$0xff]
      %v803 = vld [vmem:[%s5 + $0x168] sm:$0xff]
      %v804 = vld [vmem:[%s5 + $0x170] sm:$0xff]
      %v805 = vld [vmem:[%s5 + $0x178] sm:$0xff]
      %v806 = vld [vmem:[%s5 + $0x180] sm:$0xff]
      %v807 = vld [vmem:[%s5 + $0x188] sm:$0xff]
      %v808 = vld [vmem:[%s5 + $0x190] sm:$0xff]
      %v809 = vld [vmem:[%s5 + $0x198] sm:$0xff]
      %v810 = vld [vmem:[%s5 + $0x1a0] sm:$0xff]
      %v811 = vld [vmem:[%s5 + $0x1a8] sm:$0xff]
      %v812 = vld [vmem:[%s5 + $0x1b0] sm:$0xff]
      %v813 = vld [vmem:[%s5 + $0x1b8] sm:$0xff]
      %v814 = vld [vmem:[%s5 + $0x1c0] sm:$0xff]
      %v815 = vld [vmem:[%s5 + $0x1c8] sm:$0xff]
      %v816 = vld [vmem:[%s5 + $0x1d0] sm:$0xff]
      %v817 = vld [vmem:[%s5 + $0x1d8] sm:$0xff]
      %v818 = vld [vmem:[%s5 + $0x1e0] sm:$0xff]
      %v819 = vld [vmem:[%s5 + $0x1e8] sm:$0xff]
      %v820 = vld [vmem:[%s5 + $0x1f0] sm:$0xff]
      %v821 = vld [vmem:[%s5 + $0x1f8] sm:$0xff]
      %v822 = vld [vmem:[%s5 + $0x200] sm:$0xff]
      %v823 = vld [vmem:[%s5 + $0x208] sm:$0xff]
      %v824 = vld [vmem:[%s5 + $0x210] sm:$0xff]
      %v825 = vld [vmem:[%s5 + $0x218] sm:$0xff]
      %v826 = vld [vmem:[%s5 + $0x220] sm:$0xff]
      %v827 = vld [vmem:[%s5 + $0x228] sm:$0xff]
      %v828 = vld [vmem:[%s5 + $0x230] sm:$0xff]
      %v829 = vld [vmem:[%s5 + $0x238] sm:$0xff]
      %v830 = vld [vmem:[%s5 + $0x240] sm:$0xff]
      %v831 = vld [vmem:[%s5 + $0x248] sm:$0xff]
      %v832 = vld [vmem:[%s5 + $0x250] sm:$0xff]
      %v833 = vld [vmem:[%s5 + $0x258] sm:$0xff]
      %v834 = vld [vmem:[%s5 + $0x260] sm:$0xff]
      %v835 = vld [vmem:[%s5 + $0x268] sm:$0xff]
      %v836 = vld [vmem:[%s5 + $0x270] sm:$0xff]
      %v837 = vld [vmem:[%s5 + $0x278] sm:$0xff]
      %v838 = vld [vmem:[%s5 + $0x280] sm:$0xff]
      %v839 = vld [vmem:[%s5 + $0x288] sm:$0xff]
      %v840 = vld [vmem:[%s5 + $0x290] sm:$0xff]
      %v841 = vld [vmem:[%s5 + $0x298] sm:$0xff]
      %v842 = vld [vmem:[%s5 + $0x2a0] sm:$0xff]
      %v843 = vld [vmem:[%s5 + $0x2a8] sm:$0xff]
      %v844 = vld [vmem:[%s5 + $0x2b0] sm:$0xff]
      %v845 = vld [vmem:[%s5 + $0x2b8] sm:$0xff]
      %v846 = vld [vmem:[%s5 + $0x2c0] sm:$0xff]
      %v847 = vld [vmem:[%s5 + $0x2c8] sm:$0xff]
      %v848 = vld [vmem:[%s5 + $0x2d0] sm:$0xff]
      %v849 = vld [vmem:[%s5 + $0x2d8] sm:$0xff]
      %v850 = vld [vmem:[%s5 + $0x2e0] sm:$0xff]
      %v851 = vld [vmem:[%s5 + $0x2e8] sm:$0xff]
      %v852 = vld [vmem:[%s5 + $0x2f0] sm:$0xff]
      %v853 = vld [vmem:[%s5 + $0x2f8] sm:$0xff]
      %v854 = vld [vmem:[%s5 + $0x300] sm:$0xff]
      %v855 = vld [vmem:[%s5 + $0x308] sm:$0xff]
      %v856 = vld [vmem:[%s5 + $0x310] sm:$0xff]
      %v857 = vld [vmem:[%s5 + $0x318] sm:$0xff]
      %v858 = vld [vmem:[%s5 + $0x320] sm:$0xff]
      %v859 = vld [vmem:[%s5 + $0x328] sm:$0xff]
      %v860 = vld [vmem:[%s5 + $0x330] sm:$0xff]
      %v861 = vld [vmem:[%s5 + $0x338] sm:$0xff]
      %v862 = vld [vmem:[%s5 + $0x340] sm:$0xff]
      %v863 = vld [vmem:[%s5 + $0x348] sm:$0xff]
      %v864 = vld [vmem:[%s5 + $0x350] sm:$0xff]
      %v865 = vld [vmem:[%s5 + $0x358] sm:$0xff]
      %v866 = vld [vmem:[%s5 + $0x360] sm:$0xff]
      %v867 = vld [vmem:[%s5 + $0x368] sm:$0xff]
      %v868 = vld [vmem:[%s5 + $0x370] sm:$0xff]
      %v869 = vld [vmem:[%s5 + $0x378] sm:$0xff]
      %v870 = vld [vmem:[%s5 + $0x380] sm:$0xff]
      %v871 = vld [vmem:[%s5 + $0x388] sm:$0xff]
      %v872 = vld [vmem:[%s5 + $0x390] sm:$0xff]
      %v873 = vld [vmem:[%s5 + $0x398] sm:$0xff]
      %v874 = vld [vmem:[%s5 + $0x3a0] sm:$0xff]
      %v875 = vld [vmem:[%s5 + $0x3a8] sm:$0xff]
      %v876 = vld [vmem:[%s5 + $0x3b0] sm:$0xff]
      %v877 = vld [vmem:[%s5 + $0x3b8] sm:$0xff]
      %v878 = vld [vmem:[%s5 + $0x3c0] sm:$0xff]
      %v879 = vld [vmem:[%s5 + $0x3c8] sm:$0xff]
      %v880 = vld [vmem:[%s5 + $0x3d0] sm:$0xff]
      %v881 = vld [vmem:[%s5 + $0x3d8] sm:$0xff]
      %v882 = vld [vmem:[%s5 + $0x3e0] sm:$0xff]
      %v883 = vld [vmem:[%s5 + $0x3e8] sm:$0xff]
      %v884 = vld [vmem:[%s5 + $0x3f0] sm:$0xff]
      %v885 = vld [vmem:[%s5 + $0x3f8] sm:$0xff]
      %v886 = vld [vmem:[%s6] sm:$0x1]
      %v888 = vlaneseq
      %v889 = vshrl.u32 %v888, 7
      %v890 = vsub.s32 0, %v889
      %v891 = vrot.slane %v886, %v890
      %893 = vmatprep.subr.mxu0 0.0
      %894 = vmatpush1.msra.mxu0 %v758
      %895 = vmatprep.subr.mxu0 0.0
      %896 = vmatpush1.msra.mxu0 %v759
      %897 = vmatprep.subr.mxu0 0.0
      %898 = vmatpush1.msra.mxu0 %v760
      %899 = vmatprep.subr.mxu0 0.0
      %900 = vmatpush1.msra.mxu0 %v761
      %901 = vmatprep.subr.mxu0 0.0
      %902 = vmatpush1.msra.mxu0 %v762
      %903 = vmatprep.subr.mxu0 0.0
      %904 = vmatpush1.msra.mxu0 %v763
      %905 = vmatprep.subr.mxu0 0.0
      %906 = vmatpush1.msra.mxu0 %v764
      %907 = vmatprep.subr.mxu0 0.0
      %908 = vmatpush1.msra.mxu0 %v765
      %909 = vmatprep.subr.mxu0 0.0
      %910 = vmatpush1.msra.mxu0 %v766
      %911 = vmatprep.subr.mxu0 0.0
      %912 = vmatpush1.msra.mxu0 %v767
      %913 = vmatprep.subr.mxu0 0.0
      %914 = vmatpush1.msra.mxu0 %v768
      %915 = vmatprep.subr.mxu0 0.0
      %916 = vmatpush1.msra.mxu0 %v769
      %917 = vmatprep.subr.mxu0 0.0
      %918 = vmatpush1.msra.mxu0 %v770
      %919 = vmatprep.subr.mxu0 0.0
      %920 = vmatpush1.msra.mxu0 %v771
      %921 = vmatprep.subr.mxu0 0.0
      %922 = vmatpush1.msra.mxu0 %v772
      %923 = vmatprep.subr.mxu0 0.0
      %924 = vmatpush1.msra.mxu0 %v773
      %925 = vmatprep.subr.mxu0 0.0
      %926 = vmatpush1.msra.mxu0 %v774
      %927 = vmatprep.subr.mxu0 0.0
      %928 = vmatpush1.msra.mxu0 %v775
      %929 = vmatprep.subr.mxu0 0.0
      %930 = vmatpush1.msra.mxu0 %v776
      %931 = vmatprep.subr.mxu0 0.0
      %932 = vmatpush1.msra.mxu0 %v777
      %933 = vmatprep.subr.mxu0 0.0
      %934 = vmatpush1.msra.mxu0 %v778
      %935 = vmatprep.subr.mxu0 0.0
      %936 = vmatpush1.msra.mxu0 %v779
      %937 = vmatprep.subr.mxu0 0.0
      %938 = vmatpush1.msra.mxu0 %v780
      %939 = vmatprep.subr.mxu0 0.0
      %940 = vmatpush1.msra.mxu0 %v781
      %941 = vmatprep.subr.mxu0 0.0
      %942 = vmatpush1.msra.mxu0 %v782
      %943 = vmatprep.subr.mxu0 0.0
      %944 = vmatpush1.msra.mxu0 %v783
      %945 = vmatprep.subr.mxu0 0.0
      %946 = vmatpush1.msra.mxu0 %v784
      %947 = vmatprep.subr.mxu0 0.0
      %948 = vmatpush1.msra.mxu0 %v785
      %949 = vmatprep.subr.mxu0 0.0
      %950 = vmatpush1.msra.mxu0 %v786
      %951 = vmatprep.subr.mxu0 0.0
      %952 = vmatpush1.msra.mxu0 %v787
      %953 = vmatprep.subr.mxu0 0.0
      %954 = vmatpush1.msra.mxu0 %v788
      %955 = vmatprep.subr.mxu0 0.0
      %956 = vmatpush1.msra.mxu0 %v789
      %957 = vmatprep.mubr.f32.mxu0 %v444
      %958 = vmatmul.mubr.f32.gmra.mrb[0].mxu0 %v443
      %v959 = vpop.f32.mrb[0].mxu0
      %v960 = vadd.f32 %v891, %v959
      %v961 = vpop.f32.mrb[0].mxu0
      %962 = vmatprep.mubr.f32.mxu0 %v452
      %963 = vmatmul.mubr.f32.gmra.mrb[0].mxu0 %v451
      %v964 = vpop.f32.mrb[0].mxu0
      %v965 = vadd.f32 %v891, %v964
      %v966 = vpop.f32.mrb[0].mxu0
      %967 = vdwg.mxu0
      %968 = vmatprep.subr.mxu0 0.0
      %969 = vmatpush1.msra.mxu0 %v790
      %970 = vmatprep.subr.mxu0 0.0
      %971 = vmatpush1.msra.mxu0 %v791
      %972 = vmatprep.subr.mxu0 0.0
      %973 = vmatpush1.msra.mxu0 %v792
      %974 = vmatprep.subr.mxu0 0.0
      %975 = vmatpush1.msra.mxu0 %v793
      %976 = vmatprep.subr.mxu0 0.0
      %977 = vmatpush1.msra.mxu0 %v794
      %978 = vmatprep.subr.mxu0 0.0
      %979 = vmatpush1.msra.mxu0 %v795
      %980 = vmatprep.subr.mxu0 0.0
      %981 = vmatpush1.msra.mxu0 %v796
      %982 = vmatprep.subr.mxu0 0.0
      %983 = vmatpush1.msra.mxu0 %v797
      %984 = vmatprep.subr.mxu0 0.0
      %985 = vmatpush1.msra.mxu0 %v798
      %986 = vmatprep.subr.mxu0 0.0
      %987 = vmatpush1.msra.mxu0 %v799
      %988 = vmatprep.subr.mxu0 0.0
      %989 = vmatpush1.msra.mxu0 %v800
      %990 = vmatprep.subr.mxu0 0.0
      %991 = vmatpush1.msra.mxu0 %v801
      %992 = vmatprep.subr.mxu0 0.0
      %993 = vmatpush1.msra.mxu0 %v802
      %994 = vmatprep.subr.mxu0 0.0
      %995 = vmatpush1.msra.mxu0 %v803
      %996 = vmatprep.subr.mxu0 0.0
      %997 = vmatpush1.msra.mxu0 %v804
      %998 = vmatprep.subr.mxu0 0.0
      %999 = vmatpush1.msra.mxu0 %v805
      %1000 = vmatprep.subr.mxu0 0.0
      %1001 = vmatpush1.msra.mxu0 %v806
      %1002 = vmatprep.subr.mxu0 0.0
      %1003 = vmatpush1.msra.mxu0 %v807
      %1004 = vmatprep.subr.mxu0 0.0
      %1005 = vmatpush1.msra.mxu0 %v808
      %1006 = vmatprep.subr.mxu0 0.0
      %1007 = vmatpush1.msra.mxu0 %v809
      %1008 = vmatprep.subr.mxu0 0.0
      %1009 = vmatpush1.msra.mxu0 %v810
      %1010 = vmatprep.subr.mxu0 0.0
      %1011 = vmatpush1.msra.mxu0 %v811
      %1012 = vmatprep.subr.mxu0 0.0
      %1013 = vmatpush1.msra.mxu0 %v812
      %1014 = vmatprep.subr.mxu0 0.0
      %1015 = vmatpush1.msra.mxu0 %v813
      %1016 = vmatprep.subr.mxu0 0.0
      %1017 = vmatpush1.msra.mxu0 %v814
      %1018 = vmatprep.subr.mxu0 0.0
      %1019 = vmatpush1.msra.mxu0 %v815
      %1020 = vmatprep.subr.mxu0 0.0
      %1021 = vmatpush1.msra.mxu0 %v816
      %1022 = vmatprep.subr.mxu0 0.0
      %1023 = vmatpush1.msra.mxu0 %v817
      %1024 = vmatprep.subr.mxu0 0.0
      %1025 = vmatpush1.msra.mxu0 %v818
      %1026 = vmatprep.subr.mxu0 0.0
      %1027 = vmatpush1.msra.mxu0 %v819
      %1028 = vmatprep.subr.mxu0 0.0
      %1029 = vmatpush1.msra.mxu0 %v820
      %1030 = vmatprep.subr.mxu0 0.0
      %1031 = vmatpush1.msra.mxu0 %v821
      %1032 = vmatprep.mubr.f32.mxu0 %v446
      %1033 = vmatmul.mubr.f32.gmra.mrb[0].mxu0 %v445
      %v1034 = vpop.f32.mrb[0].mxu0
      %v1035 = vadd.f32 %v960, %v1034
      %v1036 = vpop.f32.mrb[0].mxu0
      %1037 = vmatprep.mubr.f32.mxu0 %v454
      %1038 = vmatmul.mubr.f32.gmra.mrb[0].mxu0 %v453
      %v1039 = vpop.f32.mrb[0].mxu0
      %v1040 = vadd.f32 %v965, %v1039
      %v1041 = vpop.f32.mrb[0].mxu0
      %1042 = vdwg.mxu0
      %1043 = vmatprep.subr.mxu0 0.0
      %1044 = vmatpush1.msra.mxu0 %v822
      %1045 = vmatprep.subr.mxu0 0.0
      %1046 = vmatpush1.msra.mxu0 %v823
      %1047 = vmatprep.subr.mxu0 0.0
      %1048 = vmatpush1.msra.mxu0 %v824
      %1049 = vmatprep.subr.mxu0 0.0
      %1050 = vmatpush1.msra.mxu0 %v825
      %1051 = vmatprep.subr.mxu0 0.0
      %1052 = vmatpush1.msra.mxu0 %v826
      %1053 = vmatprep.subr.mxu0 0.0
      %1054 = vmatpush1.msra.mxu0 %v827
      %1055 = vmatprep.subr.mxu0 0.0
      %1056 = vmatpush1.msra.mxu0 %v828
      %1057 = vmatprep.subr.mxu0 0.0
      %1058 = vmatpush1.msra.mxu0 %v829
      %1059 = vmatprep.subr.mxu0 0.0
      %1060 = vmatpush1.msra.mxu0 %v830
      %1061 = vmatprep.subr.mxu0 0.0
      %1062 = vmatpush1.msra.mxu0 %v831
      %1063 = vmatprep.subr.mxu0 0.0
      %1064 = vmatpush1.msra.mxu0 %v832
      %1065 = vmatprep.subr.mxu0 0.0
      %1066 = vmatpush1.msra.mxu0 %v833
      %1067 = vmatprep.subr.mxu0 0.0
      %1068 = vmatpush1.msra.mxu0 %v834
      %1069 = vmatprep.subr.mxu0 0.0
      %1070 = vmatpush1.msra.mxu0 %v835
      %1071 = vmatprep.subr.mxu0 0.0
      %1072 = vmatpush1.msra.mxu0 %v836
      %1073 = vmatprep.subr.mxu0 0.0
      %1074 = vmatpush1.msra.mxu0 %v837
      %1075 = vmatprep.subr.mxu0 0.0
      %1076 = vmatpush1.msra.mxu0 %v838
      %1077 = vmatprep.subr.mxu0 0.0
      %1078 = vmatpush1.msra.mxu0 %v839
      %1079 = vmatprep.subr.mxu0 0.0
      %1080 = vmatpush1.msra.mxu0 %v840
      %1081 = vmatprep.subr.mxu0 0.0
      %1082 = vmatpush1.msra.mxu0 %v841
      %1083 = vmatprep.subr.mxu0 0.0
      %1084 = vmatpush1.msra.mxu0 %v842
      %1085 = vmatprep.subr.mxu0 0.0
      %1086 = vmatpush1.msra.mxu0 %v843
      %1087 = vmatprep.subr.mxu0 0.0
      %1088 = vmatpush1.msra.mxu0 %v844
      %1089 = vmatprep.subr.mxu0 0.0
      %1090 = vmatpush1.msra.mxu0 %v845
      %1091 = vmatprep.subr.mxu0 0.0
      %1092 = vmatpush1.msra.mxu0 %v846
      %1093 = vmatprep.subr.mxu0 0.0
      %1094 = vmatpush1.msra.mxu0 %v847
      %1095 = vmatprep.subr.mxu0 0.0
      %1096 = vmatpush1.msra.mxu0 %v848
      %1097 = vmatprep.subr.mxu0 0.0
      %1098 = vmatpush1.msra.mxu0 %v849
      %1099 = vmatprep.subr.mxu0 0.0
      %1100 = vmatpush1.msra.mxu0 %v850
      %1101 = vmatprep.subr.mxu0 0.0
      %1102 = vmatpush1.msra.mxu0 %v851
      %1103 = vmatprep.subr.mxu0 0.0
      %1104 = vmatpush1.msra.mxu0 %v852
      %1105 = vmatprep.subr.mxu0 0.0
      %1106 = vmatpush1.msra.mxu0 %v853
      %1107 = vmatprep.mubr.f32.mxu0 %v448
      %1108 = vmatmul.mubr.f32.gmra.mrb[0].mxu0 %v447
      %v1109 = vpop.f32.mrb[0].mxu0
      %v1110 = vadd.f32 %v1035, %v1109
      %v1111 = vpop.f32.mrb[0].mxu0
      %1112 = vmatprep.mubr.f32.mxu0 %v456
      %1113 = vmatmul.mubr.f32.gmra.mrb[0].mxu0 %v455
      %v1114 = vpop.f32.mrb[0].mxu0
      %v1115 = vadd.f32 %v1040, %v1114
      %v1116 = vpop.f32.mrb[0].mxu0
      %1117 = vdwg.mxu0
      %1118 = vmatprep.subr.mxu0 0.0
      %1119 = vmatpush1.msra.mxu0 %v854
      %1120 = vmatprep.subr.mxu0 0.0
      %1121 = vmatpush1.msra.mxu0 %v855
      %1122 = vmatprep.subr.mxu0 0.0
      %1123 = vmatpush1.msra.mxu0 %v856
      %1124 = vmatprep.subr.mxu0 0.0
      %1125 = vmatpush1.msra.mxu0 %v857
      %1126 = vmatprep.subr.mxu0 0.0
      %1127 = vmatpush1.msra.mxu0 %v858
      %1128 = vmatprep.subr.mxu0 0.0
      %1129 = vmatpush1.msra.mxu0 %v859
      %1130 = vmatprep.subr.mxu0 0.0
      %1131 = vmatpush1.msra.mxu0 %v860
      %1132 = vmatprep.subr.mxu0 0.0
      %1133 = vmatpush1.msra.mxu0 %v861
      %1134 = vmatprep.subr.mxu0 0.0
      %1135 = vmatpush1.msra.mxu0 %v862
      %1136 = vmatprep.subr.mxu0 0.0
      %1137 = vmatpush1.msra.mxu0 %v863
      %1138 = vmatprep.subr.mxu0 0.0
      %1139 = vmatpush1.msra.mxu0 %v864
      %1140 = vmatprep.subr.mxu0 0.0
      %1141 = vmatpush1.msra.mxu0 %v865
      %1142 = vmatprep.subr.mxu0 0.0
      %1143 = vmatpush1.msra.mxu0 %v866
      %1144 = vmatprep.subr.mxu0 0.0
      %1145 = vmatpush1.msra.mxu0 %v867
      %1146 = vmatprep.subr.mxu0 0.0
      %1147 = vmatpush1.msra.mxu0 %v868
      %1148 = vmatprep.subr.mxu0 0.0
      %1149 = vmatpush1.msra.mxu0 %v869
      %1150 = vmatprep.subr.mxu0 0.0
      %1151 = vmatpush1.msra.mxu0 %v870
      %1152 = vmatprep.subr.mxu0 0.0
      %1153 = vmatpush1.msra.mxu0 %v871
      %1154 = vmatprep.subr.mxu0 0.0
      %1155 = vmatpush1.msra.mxu0 %v872
      %1156 = vmatprep.subr.mxu0 0.0
      %1157 = vmatpush1.msra.mxu0 %v873
      %1158 = vmatprep.subr.mxu0 0.0
      %1159 = vmatpush1.msra.mxu0 %v874
      %1160 = vmatprep.subr.mxu0 0.0
      %1161 = vmatpush1.msra.mxu0 %v875
      %1162 = vmatprep.subr.mxu0 0.0
      %1163 = vmatpush1.msra.mxu0 %v876
      %1164 = vmatprep.subr.mxu0 0.0
      %1165 = vmatpush1.msra.mxu0 %v877
      %1166 = vmatprep.subr.mxu0 0.0
      %1167 = vmatpush1.msra.mxu0 %v878
      %1168 = vmatprep.subr.mxu0 0.0
      %1169 = vmatpush1.msra.mxu0 %v879
      %1170 = vmatprep.subr.mxu0 0.0
      %1171 = vmatpush1.msra.mxu0 %v880
      %1172 = vmatprep.subr.mxu0 0.0
      %1173 = vmatpush1.msra.mxu0 %v881
      %1174 = vmatprep.subr.mxu0 0.0
      %1175 = vmatpush1.msra.mxu0 %v882
      %1176 = vmatprep.subr.mxu0 0.0
      %1177 = vmatpush1.msra.mxu0 %v883
      %1178 = vmatprep.subr.mxu0 0.0
      %1179 = vmatpush1.msra.mxu0 %v884
      %1180 = vmatprep.subr.mxu0 0.0
      %1181 = vmatpush1.msra.mxu0 %v885
      %1182 = vmatprep.mubr.f32.mxu0 %v450
      %1183 = vmatmul.mubr.f32.gmra.mrb[0].mxu0 %v449
      %v1184 = vpop.f32.mrb[0].mxu0
      %v1185 = vadd.f32 %v1110, %v1184
      %v1186 = vpop.f32.mrb[0].mxu0
      %1187 = vmatprep.mubr.f32.mxu0 %v458
      %1188 = vmatmul.mubr.f32.gmra.mrb[0].mxu0 %v457
      %v1189 = vpop.f32.mrb[0].mxu0
      %v1190 = vadd.f32 %v1115, %v1189
      %v1191 = vpop.f32.mrb[0].mxu0
      %1192 = vdwg.mxu0
      %vm1193 = vcmask 523264
      %1194 = vst.msk [vmem:[#allocation2] sm:$0xff] %vm1193, 0.0
      %1195 = vst.msk [vmem:[#allocation2 + $0x18] sm:$0xff] %vm1193, 0.0
      %1196 = vst.msk [vmem:[#allocation2 + $0x8] sm:$0xff] %vm1193, %v1185
      %1197 = vst.msk [vmem:[#allocation2 + $0x10] sm:$0xff] %vm1193, %v1190
      %s1198 = scalar_lea.vmem %s7, 64
      %v1199 = vld [vmem:[%s1198] sm:$0xff]
      %v1200 = vld [vmem:[%s1198 + $0x8] sm:$0xff]
      %v1201 = vld [vmem:[%s1198 + $0x10] sm:$0xff]
      %v1202 = vld [vmem:[%s1198 + $0x18] sm:$0xff]
      %v1203 = vld [vmem:[%s1198 + $0x20] sm:$0xff]
      %v1204 = vld [vmem:[%s1198 + $0x28] sm:$0xff]
      %v1205 = vld [vmem:[%s1198 + $0x30] sm:$0xff]
      %v1206 = vld [vmem:[%s1198 + $0x38] sm:$0xff]
      %v1207 = vld [vmem:[#allocation2 + $0x4] sm:$0xff]
      %v1208 = vld [vmem:[#allocation2 + $0xc] sm:$0xff]
      %v1209 = vld [vmem:[%s7] sm:$0xff]
      %v1210 = vld [vmem:[%s7 + $0x8] sm:$0xff]
      %v1211 = vld [vmem:[%s7 + $0x10] sm:$0xff]
      %v1212 = vld [vmem:[%s7 + $0x18] sm:$0xff]
      %v1213 = vld [vmem:[%s7 + $0x20] sm:$0xff]
      %v1214 = vld [vmem:[%s7 + $0x28] sm:$0xff]
      %v1215 = vld [vmem:[%s7 + $0x30] sm:$0xff]
      %v1216 = vld [vmem:[%s7 + $0x38] sm:$0xff]
      %v1218 = vsel %vm1193, %v1207, 0
      %v1221 = vsel %vm1193, %v1208, 0
      %1223 = vmatprep.subr.mxu0 0.0
      %1224 = vmatpush1.msra.mxu0 %v1209
      %1225 = vmatprep.subr.mxu0 0.0
      %1226 = vmatpush1.msra.mxu0 %v1210
      %1227 = vmatprep.subr.mxu0 0.0
      %1228 = vmatpush1.msra.mxu0 %v1211
      %1229 = vmatprep.subr.mxu0 0.0
      %1230 = vmatpush1.msra.mxu0 %v1212
      %1231 = vmatprep.subr.mxu0 0.0
      %1232 = vmatpush1.msra.mxu0 %v1213
      %1233 = vmatprep.subr.mxu0 0.0
      %1234 = vmatpush1.msra.mxu0 %v1214
      %1235 = vmatprep.subr.mxu0 0.0
      %1236 = vmatpush1.msra.mxu0 %v1215
      %1237 = vmatprep.subr.mxu0 0.0
      %1238 = vmatpush1.msra.mxu0 %v1216
      %1239 = vmatprep.subr.mxu0 0.0
      %1240 = vmatpush1.msra.mxu0 0.0
      %1241 = vmatprep.subr.mxu0 0.0
      %1242 = vmatpush1.msra.mxu0 0.0
      %1243 = vmatprep.subr.mxu0 0.0
      %1244 = vmatpush1.msra.mxu0 0.0
      %1245 = vmatprep.subr.mxu0 0.0
      %1246 = vmatpush1.msra.mxu0 0.0
      %1247 = vmatprep.subr.mxu0 0.0
      %1248 = vmatpush1.msra.mxu0 0.0
      %1249 = vmatprep.subr.mxu0 0.0
      %1250 = vmatpush1.msra.mxu0 0.0
      %1251 = vmatprep.subr.mxu0 0.0
      %1252 = vmatpush1.msra.mxu0 0.0
      %1253 = vmatprep.subr.mxu0 0.0
      %1254 = vmatpush1.msra.mxu0 0.0
      %1255 = vmatprep.subr.mxu0 0.0
      %1256 = vmatpush1.msra.mxu0 0.0
      %1257 = vmatprep.subr.mxu0 0.0
      %1258 = vmatpush1.msra.mxu0 0.0
      %1259 = vmatprep.subr.mxu0 0.0
      %1260 = vmatpush1.msra.mxu0 0.0
      %1261 = vmatprep.subr.mxu0 0.0
      %1262 = vmatpush1.msra.mxu0 0.0
      %1263 = vmatprep.subr.mxu0 0.0
      %1264 = vmatpush1.msra.mxu0 0.0
      %1265 = vmatprep.subr.mxu0 0.0
      %1266 = vmatpush1.msra.mxu0 0.0
      %1267 = vmatprep.subr.mxu0 0.0
      %1268 = vmatpush1.msra.mxu0 0.0
      %1269 = vmatprep.subr.mxu0 0.0
      %1270 = vmatpush1.msra.mxu0 0.0
      %1271 = vmatprep.subr.mxu0 0.0
      %1272 = vmatpush1.msra.mxu0 0.0
      %1273 = vmatprep.subr.mxu0 0.0
      %1274 = vmatpush1.msra.mxu0 0.0
      %1275 = vmatprep.subr.mxu0 0.0
      %1276 = vmatpush1.msra.mxu0 0.0
      %1277 = vmatprep.subr.mxu0 0.0
      %1278 = vmatpush1.msra.mxu0 0.0
      %1279 = vmatprep.subr.mxu0 0.0
      %1280 = vmatpush1.msra.mxu0 0.0
      %1281 = vmatprep.subr.mxu0 0.0
      %1282 = vmatpush1.msra.mxu0 0.0
      %1283 = vmatprep.subr.mxu0 0.0
      %1284 = vmatpush1.msra.mxu0 0.0
      %1285 = vmatprep.subr.mxu0 0.0
      %1286 = vmatpush1.msra.mxu0 0.0
      %1287 = vmatprep.mubr.f32.mxu0 0.0
      %1288 = vmatmul.mubr.f32.gmra.mrb[0].mxu0 %v1218
      %v1289 = vpop.f32.mrb[0].mxu0
      %v1290 = vadd.f32 0.0, %v1289
      %v1291 = vpop.f32.mrb[0].mxu0
      %1292 = vmatprep.mubr.f32.mxu0 0.0
      %1293 = vmatmul.mubr.f32.gmra.mrb[0].mxu0 %v1221
      %v1294 = vpop.f32.mrb[0].mxu0
      %v1295 = vadd.f32 0.0, %v1294
      %v1296 = vpop.f32.mrb[0].mxu0
      %1297 = vdwg.mxu0
      %v1299 = vsel %vm1193, %v1185, 0
      %v1302 = vsel %vm1193, %v1190, 0
      %1304 = vmatprep.subr.mxu0 0.0
      %1305 = vmatpush1.msra.mxu0 %v1199
      %1306 = vmatprep.subr.mxu0 0.0
      %1307 = vmatpush1.msra.mxu0 %v1200
      %1308 = vmatprep.subr.mxu0 0.0
      %1309 = vmatpush1.msra.mxu0 %v1201
      %1310 = vmatprep.subr.mxu0 0.0
      %1311 = vmatpush1.msra.mxu0 %v1202
      %1312 = vmatprep.subr.mxu0 0.0
      %1313 = vmatpush1.msra.mxu0 %v1203
      %1314 = vmatprep.subr.mxu0 0.0
      %1315 = vmatpush1.msra.mxu0 %v1204
      %1316 = vmatprep.subr.mxu0 0.0
      %1317 = vmatpush1.msra.mxu0 %v1205
      %1318 = vmatprep.subr.mxu0 0.0
      %1319 = vmatpush1.msra.mxu0 %v1206
      %1320 = vmatprep.subr.mxu0 0.0
      %1321 = vmatpush1.msra.mxu0 0.0
      %1322 = vmatprep.subr.mxu0 0.0
      %1323 = vmatpush1.msra.mxu0 0.0
      %1324 = vmatprep.subr.mxu0 0.0
      %1325 = vmatpush1.msra.mxu0 0.0
      %1326 = vmatprep.subr.mxu0 0.0
      %1327 = vmatpush1.msra.mxu0 0.0
      %1328 = vmatprep.subr.mxu0 0.0
      %1329 = vmatpush1.msra.mxu0 0.0
      %1330 = vmatprep.subr.mxu0 0.0
      %1331 = vmatpush1.msra.mxu0 0.0
      %1332 = vmatprep.subr.mxu0 0.0
      %1333 = vmatpush1.msra.mxu0 0.0
      %1334 = vmatprep.subr.mxu0 0.0
      %1335 = vmatpush1.msra.mxu0 0.0
      %1336 = vmatprep.subr.mxu0 0.0
      %1337 = vmatpush1.msra.mxu0 0.0
      %1338 = vmatprep.subr.mxu0 0.0
      %1339 = vmatpush1.msra.mxu0 0.0
      %1340 = vmatprep.subr.mxu0 0.0
      %1341 = vmatpush1.msra.mxu0 0.0
      %1342 = vmatprep.subr.mxu0 0.0
      %1343 = vmatpush1.msra.mxu0 0.0
      %1344 = vmatprep.subr.mxu0 0.0
      %1345 = vmatpush1.msra.mxu0 0.0
      %1346 = vmatprep.subr.mxu0 0.0
      %1347 = vmatpush1.msra.mxu0 0.0
      %1348 = vmatprep.subr.mxu0 0.0
      %1349 = vmatpush1.msra.mxu0 0.0
      %1350 = vmatprep.subr.mxu0 0.0
      %1351 = vmatpush1.msra.mxu0 0.0
      %1352 = vmatprep.subr.mxu0 0.0
      %1353 = vmatpush1.msra.mxu0 0.0
      %1354 = vmatprep.subr.mxu0 0.0
      %1355 = vmatpush1.msra.mxu0 0.0
      %1356 = vmatprep.subr.mxu0 0.0
      %1357 = vmatpush1.msra.mxu0 0.0
      %1358 = vmatprep.subr.mxu0 0.0
      %1359 = vmatpush1.msra.mxu0 0.0
      %1360 = vmatprep.subr.mxu0 0.0
      %1361 = vmatpush1.msra.mxu0 0.0
      %1362 = vmatprep.subr.mxu0 0.0
      %1363 = vmatpush1.msra.mxu0 0.0
      %1364 = vmatprep.subr.mxu0 0.0
      %1365 = vmatpush1.msra.mxu0 0.0
      %1366 = vmatprep.subr.mxu0 0.0
      %1367 = vmatpush1.msra.mxu0 0.0
      %1368 = vmatprep.mubr.f32.mxu0 0.0
      %1369 = vmatmul.mubr.f32.gmra.mrb[0].mxu0 %v1299
      %v1370 = vpop.f32.mrb[0].mxu0
      %v1371 = vadd.f32 %v1290, %v1370
      %v1372 = vpop.f32.mrb[0].mxu0
      %1373 = vmatprep.mubr.f32.mxu0 0.0
      %1374 = vmatmul.mubr.f32.gmra.mrb[0].mxu0 %v1302
      %v1375 = vpop.f32.mrb[0].mxu0
      %v1376 = vadd.f32 %v1295, %v1375
      %v1377 = vpop.f32.mrb[0].mxu0
      %1378 = vdwg.mxu0
      %v1379 = vld [vmem:[#allocation2 + $0xc] sm:$0xff]
      %v1380 = vld [vmem:[#allocation2 + $0x14] sm:$0xff]
      %s1381 = scalar_lea.vmem %s7, 128
      %v1382 = vld [vmem:[%s1381] sm:$0xff]
      %v1383 = vld [vmem:[%s1381 + $0x8] sm:$0xff]
      %v1384 = vld [vmem:[%s1381 + $0x10] sm:$0xff]
      %v1385 = vld [vmem:[%s1381 + $0x18] sm:$0xff]
      %v1386 = vld [vmem:[%s1381 + $0x20] sm:$0xff]
      %v1387 = vld [vmem:[%s1381 + $0x28] sm:$0xff]
      %v1388 = vld [vmem:[%s1381 + $0x30] sm:$0xff]
      %v1389 = vld [vmem:[%s1381 + $0x38] sm:$0xff]
      %v1391 = vsel %vm1193, %v1379, 0
      %v1394 = vsel %vm1193, %v1380, 0
      %1396 = vmatprep.subr.mxu0 0.0
      %1397 = vmatpush1.msra.mxu0 %v1382
      %1398 = vmatprep.subr.mxu0 0.0
      %1399 = vmatpush1.msra.mxu0 %v1383
      %1400 = vmatprep.subr.mxu0 0.0
      %1401 = vmatpush1.msra.mxu0 %v1384
      %1402 = vmatprep.subr.mxu0 0.0
      %1403 = vmatpush1.msra.mxu0 %v1385
      %1404 = vmatprep.subr.mxu0 0.0
      %1405 = vmatpush1.msra.mxu0 %v1386
      %1406 = vmatprep.subr.mxu0 0.0
      %1407 = vmatpush1.msra.mxu0 %v1387
      %1408 = vmatprep.subr.mxu0 0.0
      %1409 = vmatpush1.msra.mxu0 %v1388
      %1410 = vmatprep.subr.mxu0 0.0
      %1411 = vmatpush1.msra.mxu0 %v1389
      %1412 = vmatprep.subr.mxu0 0.0
      %1413 = vmatpush1.msra.mxu0 0.0
      %1414 = vmatprep.subr.mxu0 0.0
      %1415 = vmatpush1.msra.mxu0 0.0
      %1416 = vmatprep.subr.mxu0 0.0
      %1417 = vmatpush1.msra.mxu0 0.0
      %1418 = vmatprep.subr.mxu0 0.0
      %1419 = vmatpush1.msra.mxu0 0.0
      %1420 = vmatprep.subr.mxu0 0.0
      %1421 = vmatpush1.msra.mxu0 0.0
      %1422 = vmatprep.subr.mxu0 0.0
      %1423 = vmatpush1.msra.mxu0 0.0
      %1424 = vmatprep.subr.mxu0 0.0
      %1425 = vmatpush1.msra.mxu0 0.0
      %1426 = vmatprep.subr.mxu0 0.0
      %1427 = vmatpush1.msra.mxu0 0.0
      %1428 = vmatprep.subr.mxu0 0.0
      %1429 = vmatpush1.msra.mxu0 0.0
      %1430 = vmatprep.subr.mxu0 0.0
      %1431 = vmatpush1.msra.mxu0 0.0
      %1432 = vmatprep.subr.mxu0 0.0
      %1433 = vmatpush1.msra.mxu0 0.0
      %1434 = vmatprep.subr.mxu0 0.0
      %1435 = vmatpush1.msra.mxu0 0.0
      %1436 = vmatprep.subr.mxu0 0.0
      %1437 = vmatpush1.msra.mxu0 0.0
      %1438 = vmatprep.subr.mxu0 0.0
      %1439 = vmatpush1.msra.mxu0 0.0
      %1440 = vmatprep.subr.mxu0 0.0
      %1441 = vmatpush1.msra.mxu0 0.0
      %1442 = vmatprep.subr.mxu0 0.0
      %1443 = vmatpush1.msra.mxu0 0.0
      %1444 = vmatprep.subr.mxu0 0.0
      %1445 = vmatpush1.msra.mxu0 0.0
      %1446 = vmatprep.subr.mxu0 0.0
      %1447 = vmatpush1.msra.mxu0 0.0
      %1448 = vmatprep.subr.mxu0 0.0
      %1449 = vmatpush1.msra.mxu0 0.0
      %1450 = vmatprep.subr.mxu0 0.0
      %1451 = vmatpush1.msra.mxu0 0.0
      %1452 = vmatprep.subr.mxu0 0.0
      %1453 = vmatpush1.msra.mxu0 0.0
      %1454 = vmatprep.subr.mxu0 0.0
      %1455 = vmatpush1.msra.mxu0 0.0
      %1456 = vmatprep.subr.mxu0 0.0
      %1457 = vmatpush1.msra.mxu0 0.0
      %1458 = vmatprep.subr.mxu0 0.0
      %1459 = vmatpush1.msra.mxu0 0.0
      %1460 = vmatprep.mubr.f32.mxu0 0.0
      %1461 = vmatmul.mubr.f32.gmra.mrb[0].mxu0 %v1391
      %v1462 = vpop.f32.mrb[0].mxu0
      %v1463 = vadd.f32 0.0, %v1462
      %v1464 = vpop.f32.mrb[0].mxu0
      %1465 = vmatprep.mubr.f32.mxu0 0.0
      %1466 = vmatmul.mubr.f32.gmra.mrb[0].mxu0 %v1394
      %v1467 = vpop.f32.mrb[0].mxu0
      %v1468 = vadd.f32 0.0, %v1467
      %v1469 = vpop.f32.mrb[0].mxu0
      %1470 = vdwg.mxu0
      %v1471 = vadd.f32 %v1371, %v1463
      %v1472 = vadd.f32 %v1376, %v1468
      %v1473 = vld [vmem:[%s8] sm:$0x1]
      %v1475 = vlaneseq
      %v1476 = vshrl.u32 %v1475, 7
      %v1477 = vsub.s32 0, %v1476
      %v1478 = vrot.slane %v1473, %v1477
      %v1480 = vadd.f32 %v1471, %v1478
      %v1481 = vadd.f32 %v1472, %v1478
      %1482 = vst.msk [vmem:[#allocation2 + $0x8] sm:$0xff] %vm1193, %v1480
      %1483 = vst.msk [vmem:[#allocation2 + $0x10] sm:$0xff] %vm1193, %v1481
      %s1484 = scalar_lea.vmem %s9, 64
      %v1485 = vld [vmem:[%s1484] sm:$0xff]
      %v1486 = vld [vmem:[%s1484 + $0x8] sm:$0xff]
      %v1487 = vld [vmem:[%s1484 + $0x10] sm:$0xff]
      %v1488 = vld [vmem:[%s1484 + $0x18] sm:$0xff]
      %v1489 = vld [vmem:[%s1484 + $0x20] sm:$0xff]
      %v1490 = vld [vmem:[%s1484 + $0x28] sm:$0xff]
      %v1491 = vld [vmem:[%s1484 + $0x30] sm:$0xff]
      %v1492 = vld [vmem:[%s1484 + $0x38] sm:$0xff]
      %v1493 = vld [vmem:[#allocation2 + $0x4] sm:$0xff]
      %v1494 = vld [vmem:[#allocation2 + $0xc] sm:$0xff]
      %v1495 = vld [vmem:[%s9] sm:$0xff]
      %v1496 = vld [vmem:[%s9 + $0x8] sm:$0xff]
      %v1497 = vld [vmem:[%s9 + $0x10] sm:$0xff]
      %v1498 = vld [vmem:[%s9 + $0x18] sm:$0xff]
      %v1499 = vld [vmem:[%s9 + $0x20] sm:$0xff]
      %v1500 = vld [vmem:[%s9 + $0x28] sm:$0xff]
      %v1501 = vld [vmem:[%s9 + $0x30] sm:$0xff]
      %v1502 = vld [vmem:[%s9 + $0x38] sm:$0xff]
      %v1504 = vsel %vm1193, %v1493, 0
      %v1507 = vsel %vm1193, %v1494, 0
      %1509 = vmatprep.subr.mxu0 0.0
      %1510 = vmatpush1.msra.mxu0 %v1495
      %1511 = vmatprep.subr.mxu0 0.0
      %1512 = vmatpush1.msra.mxu0 %v1496
      %1513 = vmatprep.subr.mxu0 0.0
      %1514 = vmatpush1.msra.mxu0 %v1497
      %1515 = vmatprep.subr.mxu0 0.0
      %1516 = vmatpush1.msra.mxu0 %v1498
      %1517 = vmatprep.subr.mxu0 0.0
      %1518 = vmatpush1.msra.mxu0 %v1499
      %1519 = vmatprep.subr.mxu0 0.0
      %1520 = vmatpush1.msra.mxu0 %v1500
      %1521 = vmatprep.subr.mxu0 0.0
      %1522 = vmatpush1.msra.mxu0 %v1501
      %1523 = vmatprep.subr.mxu0 0.0
      %1524 = vmatpush1.msra.mxu0 %v1502
      %1525 = vmatprep.subr.mxu0 0.0
      %1526 = vmatpush1.msra.mxu0 0.0
      %1527 = vmatprep.subr.mxu0 0.0
      %1528 = vmatpush1.msra.mxu0 0.0
      %1529 = vmatprep.subr.mxu0 0.0
      %1530 = vmatpush1.msra.mxu0 0.0
      %1531 = vmatprep.subr.mxu0 0.0
      %1532 = vmatpush1.msra.mxu0 0.0
      %1533 = vmatprep.subr.mxu0 0.0
      %1534 = vmatpush1.msra.mxu0 0.0
      %1535 = vmatprep.subr.mxu0 0.0
      %1536 = vmatpush1.msra.mxu0 0.0
      %1537 = vmatprep.subr.mxu0 0.0
      %1538 = vmatpush1.msra.mxu0 0.0
      %1539 = vmatprep.subr.mxu0 0.0
      %1540 = vmatpush1.msra.mxu0 0.0
      %1541 = vmatprep.subr.mxu0 0.0
      %1542 = vmatpush1.msra.mxu0 0.0
      %1543 = vmatprep.subr.mxu0 0.0
      %1544 = vmatpush1.msra.mxu0 0.0
      %1545 = vmatprep.subr.mxu0 0.0
      %1546 = vmatpush1.msra.mxu0 0.0
      %1547 = vmatprep.subr.mxu0 0.0
      %1548 = vmatpush1.msra.mxu0 0.0
      %1549 = vmatprep.subr.mxu0 0.0
      %1550 = vmatpush1.msra.mxu0 0.0
      %1551 = vmatprep.subr.mxu0 0.0
      %1552 = vmatpush1.msra.mxu0 0.0
      %1553 = vmatprep.subr.mxu0 0.0
      %1554 = vmatpush1.msra.mxu0 0.0
      %1555 = vmatprep.subr.mxu0 0.0
      %1556 = vmatpush1.msra.mxu0 0.0
      %1557 = vmatprep.subr.mxu0 0.0
      %1558 = vmatpush1.msra.mxu0 0.0
      %1559 = vmatprep.subr.mxu0 0.0
      %1560 = vmatpush1.msra.mxu0 0.0
      %1561 = vmatprep.subr.mxu0 0.0
      %1562 = vmatpush1.msra.mxu0 0.0
      %1563 = vmatprep.subr.mxu0 0.0
      %1564 = vmatpush1.msra.mxu0 0.0
      %1565 = vmatprep.subr.mxu0 0.0
      %1566 = vmatpush1.msra.mxu0 0.0
      %1567 = vmatprep.subr.mxu0 0.0
      %1568 = vmatpush1.msra.mxu0 0.0
      %1569 = vmatprep.subr.mxu0 0.0
      %1570 = vmatpush1.msra.mxu0 0.0
      %1571 = vmatprep.subr.mxu0 0.0
      %1572 = vmatpush1.msra.mxu0 0.0
      %1573 = vmatprep.mubr.f32.mxu0 0.0
      %1574 = vmatmul.mubr.f32.gmra.mrb[0].mxu0 %v1504
      %v1575 = vpop.f32.mrb[0].mxu0
      %v1576 = vadd.f32 0.0, %v1575
      %v1577 = vpop.f32.mrb[0].mxu0
      %1578 = vmatprep.mubr.f32.mxu0 0.0
      %1579 = vmatmul.mubr.f32.gmra.mrb[0].mxu0 %v1507
      %v1580 = vpop.f32.mrb[0].mxu0
      %v1581 = vadd.f32 0.0, %v1580
      %v1582 = vpop.f32.mrb[0].mxu0
      %1583 = vdwg.mxu0
      %v1585 = vsel %vm1193, %v1480, 0
      %v1588 = vsel %vm1193, %v1481, 0
      %1590 = vmatprep.subr.mxu0 0.0
      %1591 = vmatpush1.msra.mxu0 %v1485
      %1592 = vmatprep.subr.mxu0 0.0
      %1593 = vmatpush1.msra.mxu0 %v1486
      %1594 = vmatprep.subr.mxu0 0.0
      %1595 = vmatpush1.msra.mxu0 %v1487
      %1596 = vmatprep.subr.mxu0 0.0
      %1597 = vmatpush1.msra.mxu0 %v1488
      %1598 = vmatprep.subr.mxu0 0.0
      %1599 = vmatpush1.msra.mxu0 %v1489
      %1600 = vmatprep.subr.mxu0 0.0
      %1601 = vmatpush1.msra.mxu0 %v1490
      %1602 = vmatprep.subr.mxu0 0.0
      %1603 = vmatpush1.msra.mxu0 %v1491
      %1604 = vmatprep.subr.mxu0 0.0
      %1605 = vmatpush1.msra.mxu0 %v1492
      %1606 = vmatprep.subr.mxu0 0.0
      %1607 = vmatpush1.msra.mxu0 0.0
      %1608 = vmatprep.subr.mxu0 0.0
      %1609 = vmatpush1.msra.mxu0 0.0
      %1610 = vmatprep.subr.mxu0 0.0
      %1611 = vmatpush1.msra.mxu0 0.0
      %1612 = vmatprep.subr.mxu0 0.0
      %1613 = vmatpush1.msra.mxu0 0.0
      %1614 = vmatprep.subr.mxu0 0.0
      %1615 = vmatpush1.msra.mxu0 0.0
      %1616 = vmatprep.subr.mxu0 0.0
      %1617 = vmatpush1.msra.mxu0 0.0
      %1618 = vmatprep.subr.mxu0 0.0
      %1619 = vmatpush1.msra.mxu0 0.0
      %1620 = vmatprep.subr.mxu0 0.0
      %1621 = vmatpush1.msra.mxu0 0.0
      %1622 = vmatprep.subr.mxu0 0.0
      %1623 = vmatpush1.msra.mxu0 0.0
      %1624 = vmatprep.subr.mxu0 0.0
      %1625 = vmatpush1.msra.mxu0 0.0
      %1626 = vmatprep.subr.mxu0 0.0
      %1627 = vmatpush1.msra.mxu0 0.0
      %1628 = vmatprep.subr.mxu0 0.0
      %1629 = vmatpush1.msra.mxu0 0.0
      %1630 = vmatprep.subr.mxu0 0.0
      %1631 = vmatpush1.msra.mxu0 0.0
      %1632 = vmatprep.subr.mxu0 0.0
      %1633 = vmatpush1.msra.mxu0 0.0
      %1634 = vmatprep.subr.mxu0 0.0
      %1635 = vmatpush1.msra.mxu0 0.0
      %1636 = vmatprep.subr.mxu0 0.0
      %1637 = vmatpush1.msra.mxu0 0.0
      %1638 = vmatprep.subr.mxu0 0.0
      %1639 = vmatpush1.msra.mxu0 0.0
      %1640 = vmatprep.subr.mxu0 0.0
      %1641 = vmatpush1.msra.mxu0 0.0
      %1642 = vmatprep.subr.mxu0 0.0
      %1643 = vmatpush1.msra.mxu0 0.0
      %1644 = vmatprep.subr.mxu0 0.0
      %1645 = vmatpush1.msra.mxu0 0.0
      %1646 = vmatprep.subr.mxu0 0.0
      %1647 = vmatpush1.msra.mxu0 0.0
      %1648 = vmatprep.subr.mxu0 0.0
      %1649 = vmatpush1.msra.mxu0 0.0
      %1650 = vmatprep.subr.mxu0 0.0
      %1651 = vmatpush1.msra.mxu0 0.0
      %1652 = vmatprep.subr.mxu0 0.0
      %1653 = vmatpush1.msra.mxu0 0.0
      %1654 = vmatprep.mubr.f32.mxu0 0.0
      %1655 = vmatmul.mubr.f32.gmra.mrb[0].mxu0 %v1585
      %v1656 = vpop.f32.mrb[0].mxu0
      %v1657 = vadd.f32 %v1576, %v1656
      %v1658 = vpop.f32.mrb[0].mxu0
      %1659 = vmatprep.mubr.f32.mxu0 0.0
      %1660 = vmatmul.mubr.f32.gmra.mrb[0].mxu0 %v1588
      %v1661 = vpop.f32.mrb[0].mxu0
      %v1662 = vadd.f32 %v1581, %v1661
      %v1663 = vpop.f32.mrb[0].mxu0
      %1664 = vdwg.mxu0
      %v1665 = vld [vmem:[#allocation2 + $0xc] sm:$0xff]
      %v1666 = vld [vmem:[#allocation2 + $0x14] sm:$0xff]
      %s1667 = scalar_lea.vmem %s9, 128
      %v1668 = vld [vmem:[%s1667] sm:$0xff]
      %v1669 = vld [vmem:[%s1667 + $0x8] sm:$0xff]
      %v1670 = vld [vmem:[%s1667 + $0x10] sm:$0xff]
      %v1671 = vld [vmem:[%s1667 + $0x18] sm:$0xff]
      %v1672 = vld [vmem:[%s1667 + $0x20] sm:$0xff]
      %v1673 = vld [vmem:[%s1667 + $0x28] sm:$0xff]
      %v1674 = vld [vmem:[%s1667 + $0x30] sm:$0xff]
      %v1675 = vld [vmem:[%s1667 + $0x38] sm:$0xff]
      %v1677 = vsel %vm1193, %v1665, 0
      %v1680 = vsel %vm1193, %v1666, 0
      %1682 = vmatprep.subr.mxu0 0.0
      %1683 = vmatpush1.msra.mxu0 %v1668
      %1684 = vmatprep.subr.mxu0 0.0
      %1685 = vmatpush1.msra.mxu0 %v1669
      %1686 = vmatprep.subr.mxu0 0.0
      %1687 = vmatpush1.msra.mxu0 %v1670
      %1688 = vmatprep.subr.mxu0 0.0
      %1689 = vmatpush1.msra.mxu0 %v1671
      %1690 = vmatprep.subr.mxu0 0.0
      %1691 = vmatpush1.msra.mxu0 %v1672
      %1692 = vmatprep.subr.mxu0 0.0
      %1693 = vmatpush1.msra.mxu0 %v1673
      %1694 = vmatprep.subr.mxu0 0.0
      %1695 = vmatpush1.msra.mxu0 %v1674
      %1696 = vmatprep.subr.mxu0 0.0
      %1697 = vmatpush1.msra.mxu0 %v1675
      %1698 = vmatprep.subr.mxu0 0.0
      %1699 = vmatpush1.msra.mxu0 0.0
      %1700 = vmatprep.subr.mxu0 0.0
      %1701 = vmatpush1.msra.mxu0 0.0
      %1702 = vmatprep.subr.mxu0 0.0
      %1703 = vmatpush1.msra.mxu0 0.0
      %1704 = vmatprep.subr.mxu0 0.0
      %1705 = vmatpush1.msra.mxu0 0.0
      %1706 = vmatprep.subr.mxu0 0.0
      %1707 = vmatpush1.msra.mxu0 0.0
      %1708 = vmatprep.subr.mxu0 0.0
      %1709 = vmatpush1.msra.mxu0 0.0
      %1710 = vmatprep.subr.mxu0 0.0
      %1711 = vmatpush1.msra.mxu0 0.0
      %1712 = vmatprep.subr.mxu0 0.0
      %1713 = vmatpush1.msra.mxu0 0.0
      %1714 = vmatprep.subr.mxu0 0.0
      %1715 = vmatpush1.msra.mxu0 0.0
      %1716 = vmatprep.subr.mxu0 0.0
      %1717 = vmatpush1.msra.mxu0 0.0
      %1718 = vmatprep.subr.mxu0 0.0
      %1719 = vmatpush1.msra.mxu0 0.0
      %1720 = vmatprep.subr.mxu0 0.0
      %1721 = vmatpush1.msra.mxu0 0.0
      %1722 = vmatprep.subr.mxu0 0.0
      %1723 = vmatpush1.msra.mxu0 0.0
      %1724 = vmatprep.subr.mxu0 0.0
      %1725 = vmatpush1.msra.mxu0 0.0
      %1726 = vmatprep.subr.mxu0 0.0
      %1727 = vmatpush1.msra.mxu0 0.0
      %1728 = vmatprep.subr.mxu0 0.0
      %1729 = vmatpush1.msra.mxu0 0.0
      %1730 = vmatprep.subr.mxu0 0.0
      %1731 = vmatpush1.msra.mxu0 0.0
      %1732 = vmatprep.subr.mxu0 0.0
      %1733 = vmatpush1.msra.mxu0 0.0
      %1734 = vmatprep.subr.mxu0 0.0
      %1735 = vmatpush1.msra.mxu0 0.0
      %1736 = vmatprep.subr.mxu0 0.0
      %1737 = vmatpush1.msra.mxu0 0.0
      %1738 = vmatprep.subr.mxu0 0.0
      %1739 = vmatpush1.msra.mxu0 0.0
      %1740 = vmatprep.subr.mxu0 0.0
      %1741 = vmatpush1.msra.mxu0 0.0
      %1742 = vmatprep.subr.mxu0 0.0
      %1743 = vmatpush1.msra.mxu0 0.0
      %1744 = vmatprep.subr.mxu0 0.0
      %1745 = vmatpush1.msra.mxu0 0.0
      %1746 = vmatprep.mubr.f32.mxu0 0.0
      %1747 = vmatmul.mubr.f32.gmra.mrb[0].mxu0 %v1677
      %v1748 = vpop.f32.mrb[0].mxu0
      %v1749 = vadd.f32 0.0, %v1748
      %v1750 = vpop.f32.mrb[0].mxu0
      %1751 = vmatprep.mubr.f32.mxu0 0.0
      %1752 = vmatmul.mubr.f32.gmra.mrb[0].mxu0 %v1680
      %v1753 = vpop.f32.mrb[0].mxu0
      %v1754 = vadd.f32 0.0, %v1753
      %v1755 = vpop.f32.mrb[0].mxu0
      %1756 = vdwg.mxu0
      %v1757 = vadd.f32 %v1657, %v1749
      %v1758 = vadd.f32 %v1662, %v1754
      %v1759 = vld [vmem:[%s10] sm:$0x1]
      %v1761 = vlaneseq
      %v1762 = vshrl.u32 %v1761, 7
      %v1763 = vsub.s32 0, %v1762
      %v1764 = vrot.slane %v1759, %v1763
      %v1766 = vadd.f32 %v1757, %v1764
      %v1767 = vadd.f32 %v1758, %v1764
      %v1768 = vld [vmem:[%s11] sm:$0xff]
      %v1769 = vld [vmem:[%s11 + $0x8] sm:$0xff]
      %v1770 = vld [vmem:[%s11 + $0x10] sm:$0xff]
      %v1771 = vld [vmem:[%s11 + $0x18] sm:$0xff]
      %v1772 = vld [vmem:[%s11 + $0x20] sm:$0xff]
      %v1773 = vld [vmem:[%s11 + $0x28] sm:$0xff]
      %v1774 = vld [vmem:[%s11 + $0x30] sm:$0xff]
      %v1775 = vld [vmem:[%s11 + $0x38] sm:$0xff]
      %v1776 = vld [vmem:[%s11 + $0x40] sm:$0xff]
      %v1777 = vld [vmem:[%s11 + $0x48] sm:$0xff]
      %v1778 = vld [vmem:[%s11 + $0x50] sm:$0xff]
      %v1779 = vld [vmem:[%s11 + $0x58] sm:$0xff]
      %v1780 = vld [vmem:[%s11 + $0x60] sm:$0xff]
      %v1781 = vld [vmem:[%s11 + $0x68] sm:$0xff]
      %v1782 = vld [vmem:[%s11 + $0x70] sm:$0xff]
      %v1783 = vld [vmem:[%s11 + $0x78] sm:$0xff]
      %v1784 = vld [vmem:[%s11 + $0x80] sm:$0xff]
      %v1785 = vld [vmem:[%s11 + $0x88] sm:$0xff]
      %v1786 = vld [vmem:[%s11 + $0x90] sm:$0xff]
      %v1787 = vld [vmem:[%s11 + $0x98] sm:$0xff]
      %v1788 = vld [vmem:[%s11 + $0xa0] sm:$0xff]
      %v1789 = vld [vmem:[%s11 + $0xa8] sm:$0xff]
      %v1790 = vld [vmem:[%s11 + $0xb0] sm:$0xff]
      %v1791 = vld [vmem:[%s11 + $0xb8] sm:$0xff]
      %v1792 = vld [vmem:[%s11 + $0xc0] sm:$0xff]
      %v1793 = vld [vmem:[%s11 + $0xc8] sm:$0xff]
      %v1794 = vld [vmem:[%s11 + $0xd0] sm:$0xff]
      %v1795 = vld [vmem:[%s11 + $0xd8] sm:$0xff]
      %v1796 = vld [vmem:[%s11 + $0xe0] sm:$0xff]
      %v1797 = vld [vmem:[%s11 + $0xe8] sm:$0xff]
      %v1798 = vld [vmem:[%s11 + $0xf0] sm:$0xff]
      %v1799 = vld [vmem:[%s11 + $0xf8] sm:$0xff]
      %v1800 = vld [vmem:[%s11 + $0x100] sm:$0xff]
      %v1801 = vld [vmem:[%s11 + $0x108] sm:$0xff]
      %v1802 = vld [vmem:[%s11 + $0x110] sm:$0xff]
      %v1803 = vld [vmem:[%s11 + $0x118] sm:$0xff]
      %v1804 = vld [vmem:[%s11 + $0x120] sm:$0xff]
      %v1805 = vld [vmem:[%s11 + $0x128] sm:$0xff]
      %v1806 = vld [vmem:[%s11 + $0x130] sm:$0xff]
      %v1807 = vld [vmem:[%s11 + $0x138] sm:$0xff]
      %v1808 = vld [vmem:[%s11 + $0x140] sm:$0xff]
      %v1809 = vld [vmem:[%s11 + $0x148] sm:$0xff]
      %v1810 = vld [vmem:[%s11 + $0x150] sm:$0xff]
      %v1811 = vld [vmem:[%s11 + $0x158] sm:$0xff]
      %v1812 = vld [vmem:[%s11 + $0x160] sm:$0xff]
      %v1813 = vld [vmem:[%s11 + $0x168] sm:$0xff]
      %v1814 = vld [vmem:[%s11 + $0x170] sm:$0xff]
      %v1815 = vld [vmem:[%s11 + $0x178] sm:$0xff]
      %v1816 = vld [vmem:[%s11 + $0x180] sm:$0xff]
      %v1817 = vld [vmem:[%s11 + $0x188] sm:$0xff]
      %v1818 = vld [vmem:[%s11 + $0x190] sm:$0xff]
      %v1819 = vld [vmem:[%s11 + $0x198] sm:$0xff]
      %v1820 = vld [vmem:[%s11 + $0x1a0] sm:$0xff]
      %v1821 = vld [vmem:[%s11 + $0x1a8] sm:$0xff]
      %v1822 = vld [vmem:[%s11 + $0x1b0] sm:$0xff]
      %v1823 = vld [vmem:[%s11 + $0x1b8] sm:$0xff]
      %v1824 = vld [vmem:[%s11 + $0x1c0] sm:$0xff]
      %v1825 = vld [vmem:[%s11 + $0x1c8] sm:$0xff]
      %v1826 = vld [vmem:[%s11 + $0x1d0] sm:$0xff]
      %v1827 = vld [vmem:[%s11 + $0x1d8] sm:$0xff]
      %v1828 = vld [vmem:[%s11 + $0x1e0] sm:$0xff]
      %v1829 = vld [vmem:[%s11 + $0x1e8] sm:$0xff]
      %v1830 = vld [vmem:[%s11 + $0x1f0] sm:$0xff]
      %v1831 = vld [vmem:[%s11 + $0x1f8] sm:$0xff]
      %v1832 = vld [vmem:[#allocation3] sm:$0x1]
      %v1834 = vlaneseq
      %v1835 = vshrl.u32 %v1834, 7
      %v1836 = vsub.s32 0, %v1835
      %v1837 = vrot.slane %v1832, %v1836
      %1838 = vset.pattern.permute.xlu0 0
      %1839 = vperm.xlu0 %1838, %v1837
      %v1840 = vpop.permute.xlu0 %1839
      %v1843 = vsel %vm1193, %v1766, 0
      %v1846 = vsel %vm1193, %v1767, 0
      %1848 = vmatprep.subr.mxu0 %v1769
      %1849 = vmatpush1.msra.mxu0 %v1768
      %1850 = vmatprep.subr.mxu0 %v1777
      %1851 = vmatpush1.msra.mxu0 %v1776
      %1852 = vmatprep.subr.mxu0 %v1785
      %1853 = vmatpush1.msra.mxu0 %v1784
      %1854 = vmatprep.subr.mxu0 %v1793
      %1855 = vmatpush1.msra.mxu0 %v1792
      %1856 = vmatprep.subr.mxu0 %v1801
      %1857 = vmatpush1.msra.mxu0 %v1800
      %1858 = vmatprep.subr.mxu0 %v1809
      %1859 = vmatpush1.msra.mxu0 %v1808
      %1860 = vmatprep.subr.mxu0 %v1817
      %1861 = vmatpush1.msra.mxu0 %v1816
      %1862 = vmatprep.subr.mxu0 %v1825
      %1863 = vmatpush1.msra.mxu0 %v1824
      %1864 = vmatprep.subr.mxu0 0.0
      %1865 = vmatpush1.msra.mxu0 0.0
      %1866 = vmatprep.subr.mxu0 0.0
      %1867 = vmatpush1.msra.mxu0 0.0
      %1868 = vmatprep.subr.mxu0 0.0
      %1869 = vmatpush1.msra.mxu0 0.0
      %1870 = vmatprep.subr.mxu0 0.0
      %1871 = vmatpush1.msra.mxu0 0.0
      %1872 = vmatprep.subr.mxu0 0.0
      %1873 = vmatpush1.msra.mxu0 0.0
      %1874 = vmatprep.subr.mxu0 0.0
      %1875 = vmatpush1.msra.mxu0 0.0
      %1876 = vmatprep.subr.mxu0 0.0
      %1877 = vmatpush1.msra.mxu0 0.0
      %1878 = vmatprep.subr.mxu0 0.0
      %1879 = vmatpush1.msra.mxu0 0.0
      %1880 = vmatprep.subr.mxu0 0.0
      %1881 = vmatpush1.msra.mxu0 0.0
      %1882 = vmatprep.subr.mxu0 0.0
      %1883 = vmatpush1.msra.mxu0 0.0
      %1884 = vmatprep.subr.mxu0 0.0
      %1885 = vmatpush1.msra.mxu0 0.0
      %1886 = vmatprep.subr.mxu0 0.0
      %1887 = vmatpush1.msra.mxu0 0.0
      %1888 = vmatprep.subr.mxu0 0.0
      %1889 = vmatpush1.msra.mxu0 0.0
      %1890 = vmatprep.subr.mxu0 0.0
      %1891 = vmatpush1.msra.mxu0 0.0
      %1892 = vmatprep.subr.mxu0 0.0
      %1893 = vmatpush1.msra.mxu0 0.0
      %1894 = vmatprep.subr.mxu0 0.0
      %1895 = vmatpush1.msra.mxu0 0.0
      %1896 = vmatprep.subr.mxu0 0.0
      %1897 = vmatpush1.msra.mxu0 0.0
      %1898 = vmatprep.subr.mxu0 0.0
      %1899 = vmatpush1.msra.mxu0 0.0
      %1900 = vmatprep.subr.mxu0 0.0
      %1901 = vmatpush1.msra.mxu0 0.0
      %1902 = vmatprep.subr.mxu0 0.0
      %1903 = vmatpush1.msra.mxu0 0.0
      %1904 = vmatprep.subr.mxu0 0.0
      %1905 = vmatpush1.msra.mxu0 0.0
      %1906 = vmatprep.subr.mxu0 0.0
      %1907 = vmatpush1.msra.mxu0 0.0
      %1908 = vmatprep.subr.mxu0 0.0
      %1909 = vmatpush1.msra.mxu0 0.0
      %1910 = vmatprep.subr.mxu0 0.0
      %1911 = vmatpush1.msra.mxu0 0.0
      %1912 = vmatprep.mubr.f32.mxu0 0.0
      %1913 = vmatmul.mubr.f32.gmra.mrb[0].mxu0 %v1843
      %v1914 = vpop.f32.mrb[0].mxu0
      %v1915 = vadd.f32 %v1840, %v1914
      %v1916 = vpop.f32.mrb[0].mxu0
      %v1917 = vadd.f32 %v1840, %v1916
      %1918 = vmatprep.mubr.f32.mxu0 0.0
      %1919 = vmatmul.mubr.f32.gmra.mrb[0].mxu0 %v1846
      %v1920 = vpop.f32.mrb[0].mxu0
      %v1921 = vadd.f32 %v1840, %v1920
      %v1922 = vpop.f32.mrb[0].mxu0
      %v1923 = vadd.f32 %v1840, %v1922
      %1924 = vdwg.mxu0
      %1925 = vmatprep.subr.mxu0 %v1771
      %1926 = vmatpush1.msra.mxu0 %v1770
      %1927 = vmatprep.subr.mxu0 %v1779
      %1928 = vmatpush1.msra.mxu0 %v1778
      %1929 = vmatprep.subr.mxu0 %v1787
      %1930 = vmatpush1.msra.mxu0 %v1786
      %1931 = vmatprep.subr.mxu0 %v1795
      %1932 = vmatpush1.msra.mxu0 %v1794
      %1933 = vmatprep.subr.mxu0 %v1803
      %1934 = vmatpush1.msra.mxu0 %v1802
      %1935 = vmatprep.subr.mxu0 %v1811
      %1936 = vmatpush1.msra.mxu0 %v1810
      %1937 = vmatprep.subr.mxu0 %v1819
      %1938 = vmatpush1.msra.mxu0 %v1818
      %1939 = vmatprep.subr.mxu0 %v1827
      %1940 = vmatpush1.msra.mxu0 %v1826
      %1941 = vmatprep.subr.mxu0 0.0
      %1942 = vmatpush1.msra.mxu0 0.0
      %1943 = vmatprep.subr.mxu0 0.0
      %1944 = vmatpush1.msra.mxu0 0.0
      %1945 = vmatprep.subr.mxu0 0.0
      %1946 = vmatpush1.msra.mxu0 0.0
      %1947 = vmatprep.subr.mxu0 0.0
      %1948 = vmatpush1.msra.mxu0 0.0
      %1949 = vmatprep.subr.mxu0 0.0
      %1950 = vmatpush1.msra.mxu0 0.0
      %1951 = vmatprep.subr.mxu0 0.0
      %1952 = vmatpush1.msra.mxu0 0.0
      %1953 = vmatprep.subr.mxu0 0.0
      %1954 = vmatpush1.msra.mxu0 0.0
      %1955 = vmatprep.subr.mxu0 0.0
      %1956 = vmatpush1.msra.mxu0 0.0
      %1957 = vmatprep.subr.mxu0 0.0
      %1958 = vmatpush1.msra.mxu0 0.0
      %1959 = vmatprep.subr.mxu0 0.0
      %1960 = vmatpush1.msra.mxu0 0.0
      %1961 = vmatprep.subr.mxu0 0.0
      %1962 = vmatpush1.msra.mxu0 0.0
      %1963 = vmatprep.subr.mxu0 0.0
      %1964 = vmatpush1.msra.mxu0 0.0
      %1965 = vmatprep.subr.mxu0 0.0
      %1966 = vmatpush1.msra.mxu0 0.0
      %1967 = vmatprep.subr.mxu0 0.0
      %1968 = vmatpush1.msra.mxu0 0.0
      %1969 = vmatprep.subr.mxu0 0.0
      %1970 = vmatpush1.msra.mxu0 0.0
      %1971 = vmatprep.subr.mxu0 0.0
      %1972 = vmatpush1.msra.mxu0 0.0
      %1973 = vmatprep.subr.mxu0 0.0
      %1974 = vmatpush1.msra.mxu0 0.0
      %1975 = vmatprep.subr.mxu0 0.0
      %1976 = vmatpush1.msra.mxu0 0.0
      %1977 = vmatprep.subr.mxu0 0.0
      %1978 = vmatpush1.msra.mxu0 0.0
      %1979 = vmatprep.subr.mxu0 0.0
      %1980 = vmatpush1.msra.mxu0 0.0
      %1981 = vmatprep.subr.mxu0 0.0
      %1982 = vmatpush1.msra.mxu0 0.0
      %1983 = vmatprep.subr.mxu0 0.0
      %1984 = vmatpush1.msra.mxu0 0.0
      %1985 = vmatprep.subr.mxu0 0.0
      %1986 = vmatpush1.msra.mxu0 0.0
      %1987 = vmatprep.subr.mxu0 0.0
      %1988 = vmatpush1.msra.mxu0 0.0
      %1989 = vmatprep.mubr.f32.mxu0 0.0
      %1990 = vmatmul.mubr.f32.gmra.mrb[0].mxu0 %v1843
      %v1991 = vpop.f32.mrb[0].mxu0
      %v1992 = vadd.f32 %v1840, %v1991
      %v1993 = vpop.f32.mrb[0].mxu0
      %v1994 = vadd.f32 %v1840, %v1993
      %1995 = vmatprep.mubr.f32.mxu0 0.0
      %1996 = vmatmul.mubr.f32.gmra.mrb[0].mxu0 %v1846
      %v1997 = vpop.f32.mrb[0].mxu0
      %v1998 = vadd.f32 %v1840, %v1997
      %v1999 = vpop.f32.mrb[0].mxu0
      %v2000 = vadd.f32 %v1840, %v1999
      %2001 = vdwg.mxu0
      %2002 = vmatprep.subr.mxu0 %v1773
      %2003 = vmatpush1.msra.mxu0 %v1772
      %2004 = vmatprep.subr.mxu0 %v1781
      %2005 = vmatpush1.msra.mxu0 %v1780
      %2006 = vmatprep.subr.mxu0 %v1789
      %2007 = vmatpush1.msra.mxu0 %v1788
      %2008 = vmatprep.subr.mxu0 %v1797
      %2009 = vmatpush1.msra.mxu0 %v1796
      %2010 = vmatprep.subr.mxu0 %v1805
      %2011 = vmatpush1.msra.mxu0 %v1804
      %2012 = vmatprep.subr.mxu0 %v1813
      %2013 = vmatpush1.msra.mxu0 %v1812
      %2014 = vmatprep.subr.mxu0 %v1821
      %2015 = vmatpush1.msra.mxu0 %v1820
      %2016 = vmatprep.subr.mxu0 %v1829
      %2017 = vmatpush1.msra.mxu0 %v1828
      %2018 = vmatprep.subr.mxu0 0.0
      %2019 = vmatpush1.msra.mxu0 0.0
      %2020 = vmatprep.subr.mxu0 0.0
      %2021 = vmatpush1.msra.mxu0 0.0
      %2022 = vmatprep.subr.mxu0 0.0
      %2023 = vmatpush1.msra.mxu0 0.0
      %2024 = vmatprep.subr.mxu0 0.0
      %2025 = vmatpush1.msra.mxu0 0.0
      %2026 = vmatprep.subr.mxu0 0.0
      %2027 = vmatpush1.msra.mxu0 0.0
      %2028 = vmatprep.subr.mxu0 0.0
      %2029 = vmatpush1.msra.mxu0 0.0
      %2030 = vmatprep.subr.mxu0 0.0
      %2031 = vmatpush1.msra.mxu0 0.0
      %2032 = vmatprep.subr.mxu0 0.0
      %2033 = vmatpush1.msra.mxu0 0.0
      %2034 = vmatprep.subr.mxu0 0.0
      %2035 = vmatpush1.msra.mxu0 0.0
      %2036 = vmatprep.subr.mxu0 0.0
      %2037 = vmatpush1.msra.mxu0 0.0
      %2038 = vmatprep.subr.mxu0 0.0
      %2039 = vmatpush1.msra.mxu0 0.0
      %2040 = vmatprep.subr.mxu0 0.0
      %2041 = vmatpush1.msra.mxu0 0.0
      %2042 = vmatprep.subr.mxu0 0.0
      %2043 = vmatpush1.msra.mxu0 0.0
      %2044 = vmatprep.subr.mxu0 0.0
      %2045 = vmatpush1.msra.mxu0 0.0
      %2046 = vmatprep.subr.mxu0 0.0
      %2047 = vmatpush1.msra.mxu0 0.0
      %2048 = vmatprep.subr.mxu0 0.0
      %2049 = vmatpush1.msra.mxu0 0.0
      %2050 = vmatprep.subr.mxu0 0.0
      %2051 = vmatpush1.msra.mxu0 0.0
      %2052 = vmatprep.subr.mxu0 0.0
      %2053 = vmatpush1.msra.mxu0 0.0
      %2054 = vmatprep.subr.mxu0 0.0
      %2055 = vmatpush1.msra.mxu0 0.0
      %2056 = vmatprep.subr.mxu0 0.0
      %2057 = vmatpush1.msra.mxu0 0.0
      %2058 = vmatprep.subr.mxu0 0.0
      %2059 = vmatpush1.msra.mxu0 0.0
      %2060 = vmatprep.subr.mxu0 0.0
      %2061 = vmatpush1.msra.mxu0 0.0
      %2062 = vmatprep.subr.mxu0 0.0
      %2063 = vmatpush1.msra.mxu0 0.0
      %2064 = vmatprep.subr.mxu0 0.0
      %2065 = vmatpush1.msra.mxu0 0.0
      %2066 = vmatprep.mubr.f32.mxu0 0.0
      %2067 = vmatmul.mubr.f32.gmra.mrb[0].mxu0 %v1843
      %v2068 = vpop.f32.mrb[0].mxu0
      %v2069 = vadd.f32 %v1840, %v2068
      %v2070 = vpop.f32.mrb[0].mxu0
      %v2071 = vadd.f32 %v1840, %v2070
      %2072 = vmatprep.mubr.f32.mxu0 0.0
      %2073 = vmatmul.mubr.f32.gmra.mrb[0].mxu0 %v1846
      %v2074 = vpop.f32.mrb[0].mxu0
      %v2075 = vadd.f32 %v1840, %v2074
      %v2076 = vpop.f32.mrb[0].mxu0
      %v2077 = vadd.f32 %v1840, %v2076
      %2078 = vdwg.mxu0
      %2079 = vmatprep.subr.mxu0 %v1775
      %2080 = vmatpush1.msra.mxu0 %v1774
      %2081 = vmatprep.subr.mxu0 %v1783
      %2082 = vmatpush1.msra.mxu0 %v1782
      %2083 = vmatprep.subr.mxu0 %v1791
      %2084 = vmatpush1.msra.mxu0 %v1790
      %2085 = vmatprep.subr.mxu0 %v1799
      %2086 = vmatpush1.msra.mxu0 %v1798
      %2087 = vmatprep.subr.mxu0 %v1807
      %2088 = vmatpush1.msra.mxu0 %v1806
      %2089 = vmatprep.subr.mxu0 %v1815
      %2090 = vmatpush1.msra.mxu0 %v1814
      %2091 = vmatprep.subr.mxu0 %v1823
      %2092 = vmatpush1.msra.mxu0 %v1822
      %2093 = vmatprep.subr.mxu0 %v1831
      %2094 = vmatpush1.msra.mxu0 %v1830
      %2095 = vmatprep.subr.mxu0 0.0
      %2096 = vmatpush1.msra.mxu0 0.0
      %2097 = vmatprep.subr.mxu0 0.0
      %2098 = vmatpush1.msra.mxu0 0.0
      %2099 = vmatprep.subr.mxu0 0.0
      %2100 = vmatpush1.msra.mxu0 0.0
      %2101 = vmatprep.subr.mxu0 0.0
      %2102 = vmatpush1.msra.mxu0 0.0
      %2103 = vmatprep.subr.mxu0 0.0
      %2104 = vmatpush1.msra.mxu0 0.0
      %2105 = vmatprep.subr.mxu0 0.0
      %2106 = vmatpush1.msra.mxu0 0.0
      %2107 = vmatprep.subr.mxu0 0.0
      %2108 = vmatpush1.msra.mxu0 0.0
      %2109 = vmatprep.subr.mxu0 0.0
      %2110 = vmatpush1.msra.mxu0 0.0
      %2111 = vmatprep.subr.mxu0 0.0
      %2112 = vmatpush1.msra.mxu0 0.0
      %2113 = vmatprep.subr.mxu0 0.0
      %2114 = vmatpush1.msra.mxu0 0.0
      %2115 = vmatprep.subr.mxu0 0.0
      %2116 = vmatpush1.msra.mxu0 0.0
      %2117 = vmatprep.subr.mxu0 0.0
      %2118 = vmatpush1.msra.mxu0 0.0
      %2119 = vmatprep.subr.mxu0 0.0
      %2120 = vmatpush1.msra.mxu0 0.0
      %2121 = vmatprep.subr.mxu0 0.0
      %2122 = vmatpush1.msra.mxu0 0.0
      %2123 = vmatprep.subr.mxu0 0.0
      %2124 = vmatpush1.msra.mxu0 0.0
      %2125 = vmatprep.subr.mxu0 0.0
      %2126 = vmatpush1.msra.mxu0 0.0
      %2127 = vmatprep.subr.mxu0 0.0
      %2128 = vmatpush1.msra.mxu0 0.0
      %2129 = vmatprep.subr.mxu0 0.0
      %2130 = vmatpush1.msra.mxu0 0.0
      %2131 = vmatprep.subr.mxu0 0.0
      %2132 = vmatpush1.msra.mxu0 0.0
      %2133 = vmatprep.subr.mxu0 0.0
      %2134 = vmatpush1.msra.mxu0 0.0
      %2135 = vmatprep.subr.mxu0 0.0
      %2136 = vmatpush1.msra.mxu0 0.0
      %2137 = vmatprep.subr.mxu0 0.0
      %2138 = vmatpush1.msra.mxu0 0.0
      %2139 = vmatprep.subr.mxu0 0.0
      %2140 = vmatpush1.msra.mxu0 0.0
      %2141 = vmatprep.subr.mxu0 0.0
      %2142 = vmatpush1.msra.mxu0 0.0
      %2143 = vmatprep.mubr.f32.mxu0 0.0
      %2144 = vmatmul.mubr.f32.gmra.mrb[0].mxu0 %v1843
      %v2145 = vpop.f32.mrb[0].mxu0
      %v2146 = vadd.f32 %v1840, %v2145
      %v2147 = vpop.f32.mrb[0].mxu0
      %v2148 = vadd.f32 %v1840, %v2147
      %2149 = vmatprep.mubr.f32.mxu0 0.0
      %2150 = vmatmul.mubr.f32.gmra.mrb[0].mxu0 %v1846
      %v2151 = vpop.f32.mrb[0].mxu0
      %v2152 = vadd.f32 %v1840, %v2151
      %v2153 = vpop.f32.mrb[0].mxu0
      %v2154 = vadd.f32 %v1840, %v2153
      %2155 = vdwg.mxu0
      %v2156 = vlaneseq
      %v2157 = vshrl.u32 %v2156, 7
      %v2158 = vsub.s32 0, %v2157
      %v2159 = vrot.slane %v743, %v2158
      %v2160 = vlaneseq
      %v2161 = vshrl.u32 %v2160, 7
      %v2162 = vsub.s32 0, %v2161
      %v2163 = vrot.slane %v745, %v2162
      %v2164 = vlaneseq
      %v2165 = vshrl.u32 %v2164, 7
      %v2166 = vsub.s32 0, %v2165
      %v2167 = vrot.slane %v747, %v2166
      %v2168 = vlaneseq
      %v2169 = vshrl.u32 %v2168, 7
      %v2170 = vsub.s32 0, %v2169
      %v2171 = vrot.slane %v749, %v2170
      %v2172 = vlaneseq
      %v2173 = vshrl.u32 %v2172, 7
      %v2174 = vsub.s32 0, %v2173
      %v2175 = vrot.slane %v751, %v2174
      %v2176 = vlaneseq
      %v2177 = vshrl.u32 %v2176, 7
      %v2178 = vsub.s32 0, %v2177
      %v2179 = vrot.slane %v753, %v2178
      %v2180 = vlaneseq
      %v2181 = vshrl.u32 %v2180, 7
      %v2182 = vsub.s32 0, %v2181
      %v2183 = vrot.slane %v755, %v2182
      %v2184 = vlaneseq
      %v2185 = vshrl.u32 %v2184, 7
      %v2186 = vsub.s32 0, %v2185
      %v2187 = vrot.slane %v757, %v2186
      %v2188 = vadd.f32 %v2159, %v1915
      %v2189 = vadd.f32 %v2163, %v1917
      %v2190 = vadd.f32 %v2167, %v1992
      %v2191 = vadd.f32 %v2171, %v1994
      %v2192 = vadd.f32 %v2175, %v2069
      %v2193 = vadd.f32 %v2179, %v2071
      %v2194 = vadd.f32 %v2183, %v2146
      %v2195 = vadd.f32 %v2187, %v2148
      %v2196 = vadd.f32 %v2159, %v1921
      %v2197 = vadd.f32 %v2163, %v1923
      %v2198 = vadd.f32 %v2167, %v1998
      %v2199 = vadd.f32 %v2171, %v2000
      %v2200 = vadd.f32 %v2175, %v2075
      %v2201 = vadd.f32 %v2179, %v2077
      %v2202 = vadd.f32 %v2183, %v2152
      %v2203 = vadd.f32 %v2187, %v2154
      %v2204 = vxor.u32 %v2188, 2147483648
      %v2205 = vxor.u32 %v2189, 2147483648
      %v2206 = vxor.u32 %v2190, 2147483648
      %v2207 = vxor.u32 %v2191, 2147483648
      %v2208 = vxor.u32 %v2192, 2147483648
      %v2209 = vxor.u32 %v2193, 2147483648
      %v2210 = vxor.u32 %v2194, 2147483648
      %v2211 = vxor.u32 %v2195, 2147483648
      %v2212 = vxor.u32 %v2196, 2147483648
      %v2213 = vxor.u32 %v2197, 2147483648
      %v2214 = vxor.u32 %v2198, 2147483648
      %v2215 = vxor.u32 %v2199, 2147483648
      %v2216 = vxor.u32 %v2200, 2147483648
      %v2217 = vxor.u32 %v2201, 2147483648
      %v2218 = vxor.u32 %v2202, 2147483648
      %v2219 = vxor.u32 %v2203, 2147483648
      %v2220 = vmul.f32 %v2204, 1.442695
      %v2221 = vpow.pop %v2220
      %v2222 = vmul.f32 %v2205, 1.442695
      %v2223 = vpow.pop %v2222
      %v2224 = vmul.f32 %v2206, 1.442695
      %v2225 = vpow.pop %v2224
      %v2226 = vmul.f32 %v2207, 1.442695
      %v2227 = vpow.pop %v2226
      %v2228 = vmul.f32 %v2208, 1.442695
      %v2229 = vpow.pop %v2228
      %v2230 = vmul.f32 %v2209, 1.442695
      %v2231 = vpow.pop %v2230
      %v2232 = vmul.f32 %v2210, 1.442695
      %v2233 = vpow.pop %v2232
      %v2234 = vmul.f32 %v2211, 1.442695
      %v2235 = vpow.pop %v2234
      %v2236 = vmul.f32 %v2212, 1.442695
      %v2237 = vpow.pop %v2236
      %v2238 = vmul.f32 %v2213, 1.442695
      %v2239 = vpow.pop %v2238
      %v2240 = vmul.f32 %v2214, 1.442695
      %v2241 = vpow.pop %v2240
      %v2242 = vmul.f32 %v2215, 1.442695
      %v2243 = vpow.pop %v2242
      %v2244 = vmul.f32 %v2216, 1.442695
      %v2245 = vpow.pop %v2244
      %v2246 = vmul.f32 %v2217, 1.442695
      %v2247 = vpow.pop %v2246
      %v2248 = vmul.f32 %v2218, 1.442695
      %v2249 = vpow.pop %v2248
      %v2250 = vmul.f32 %v2219, 1.442695
      %v2251 = vpow.pop %v2250
      %v2252 = vadd.f32 %v2221, 1.0
      %v2253 = vadd.f32 %v2223, 1.0
      %v2254 = vadd.f32 %v2225, 1.0
      %v2255 = vadd.f32 %v2227, 1.0
      %v2256 = vadd.f32 %v2229, 1.0
      %v2257 = vadd.f32 %v2231, 1.0
      %v2258 = vadd.f32 %v2233, 1.0
      %v2259 = vadd.f32 %v2235, 1.0
      %v2260 = vadd.f32 %v2237, 1.0
      %v2261 = vadd.f32 %v2239, 1.0
      %v2262 = vadd.f32 %v2241, 1.0
      %v2263 = vadd.f32 %v2243, 1.0
      %v2264 = vadd.f32 %v2245, 1.0
      %v2265 = vadd.f32 %v2247, 1.0
      %v2266 = vadd.f32 %v2249, 1.0
      %v2267 = vadd.f32 %v2251, 1.0
      %v2268 = vrcp.pop %v2252
      %v2269 = vmul.f32 1.0, %v2268
      %v2270 = vrcp.pop %v2253
      %v2271 = vmul.f32 1.0, %v2270
      %v2272 = vrcp.pop %v2254
      %v2273 = vmul.f32 1.0, %v2272
      %v2274 = vrcp.pop %v2255
      %v2275 = vmul.f32 1.0, %v2274
      %v2276 = vrcp.pop %v2256
      %v2277 = vmul.f32 1.0, %v2276
      %v2278 = vrcp.pop %v2257
      %v2279 = vmul.f32 1.0, %v2278
      %v2280 = vrcp.pop %v2258
      %v2281 = vmul.f32 1.0, %v2280
      %v2282 = vrcp.pop %v2259
      %v2283 = vmul.f32 1.0, %v2282
      %v2284 = vrcp.pop %v2260
      %v2285 = vmul.f32 1.0, %v2284
      %v2286 = vrcp.pop %v2261
      %v2287 = vmul.f32 1.0, %v2286
      %v2288 = vrcp.pop %v2262
      %v2289 = vmul.f32 1.0, %v2288
      %v2290 = vrcp.pop %v2263
      %v2291 = vmul.f32 1.0, %v2290
      %v2292 = vrcp.pop %v2264
      %v2293 = vmul.f32 1.0, %v2292
      %v2294 = vrcp.pop %v2265
      %v2295 = vmul.f32 1.0, %v2294
      %v2296 = vrcp.pop %v2266
      %v2297 = vmul.f32 1.0, %v2296
      %v2298 = vrcp.pop %v2267
      %v2299 = vmul.f32 1.0, %v2298
      %v2300 = vadd.f32 %v2269, 1.0
      %v2301 = vadd.f32 %v2271, 1.0
      %v2302 = vadd.f32 %v2273, 1.0
      %v2303 = vadd.f32 %v2275, 1.0
      %v2304 = vadd.f32 %v2277, 1.0
      %v2305 = vadd.f32 %v2279, 1.0
      %v2306 = vadd.f32 %v2281, 1.0
      %v2307 = vadd.f32 %v2283, 1.0
      %v2308 = vadd.f32 %v2285, 1.0
      %v2309 = vadd.f32 %v2287, 1.0
      %v2310 = vadd.f32 %v2289, 1.0
      %v2311 = vadd.f32 %v2291, 1.0
      %v2312 = vadd.f32 %v2293, 1.0
      %v2313 = vadd.f32 %v2295, 1.0
      %v2314 = vadd.f32 %v2297, 1.0
      %v2315 = vadd.f32 %v2299, 1.0
      %v2316 = vmul.f32 %v443, %v2300
      %v2317 = vmul.f32 %v444, %v2301
      %v2318 = vmul.f32 %v445, %v2302
      %v2319 = vmul.f32 %v446, %v2303
      %v2320 = vmul.f32 %v447, %v2304
      %v2321 = vmul.f32 %v448, %v2305
      %v2322 = vmul.f32 %v449, %v2306
      %v2323 = vmul.f32 %v450, %v2307
      %v2324 = vmul.f32 %v451, %v2308
      %v2325 = vmul.f32 %v452, %v2309
      %v2326 = vmul.f32 %v453, %v2310
      %v2327 = vmul.f32 %v454, %v2311
      %v2328 = vmul.f32 %v455, %v2312
      %v2329 = vmul.f32 %v456, %v2313
      %v2330 = vmul.f32 %v457, %v2314
      %v2331 = vmul.f32 %v458, %v2315
      %2332 = vst [vmem:[%s442] sm:$0xff] %v2316
      %2333 = vst [vmem:[%s442 + $0x8] sm:$0xff] %v2317
      %2334 = vst [vmem:[%s442 + $0x10] sm:$0xff] %v2318
      %2335 = vst [vmem:[%s442 + $0x18] sm:$0xff] %v2319
      %2336 = vst [vmem:[%s442 + $0x20] sm:$0xff] %v2320
      %2337 = vst [vmem:[%s442 + $0x28] sm:$0xff] %v2321
      %2338 = vst [vmem:[%s442 + $0x30] sm:$0xff] %v2322
      %2339 = vst [vmem:[%s442 + $0x38] sm:$0xff] %v2323
      %2340 = vst [vmem:[%s442 + $0x40] sm:$0xff] %v2324
      %2341 = vst [vmem:[%s442 + $0x48] sm:$0xff] %v2325
      %2342 = vst [vmem:[%s442 + $0x50] sm:$0xff] %v2326
      %2343 = vst [vmem:[%s442 + $0x58] sm:$0xff] %v2327
      %2344 = vst [vmem:[%s442 + $0x60] sm:$0xff] %v2328
      %2345 = vst [vmem:[%s442 + $0x68] sm:$0xff] %v2329
      %2346 = vst [vmem:[%s442 + $0x70] sm:$0xff] %v2330
      %2347 = vst [vmem:[%s442 + $0x78] sm:$0xff] %v2331
      %p2348 = scmp.lt.s32.totalorder %s26, 1
      %s2349 = scalar_select %p2348, %s26, 1
      %s2350 = smul.addr %s2349, 16
      %s2351 = smul.addr %s2350, 8
      %s2352 = scalar_lea.vmem %s13, %s2351
      // Predicated region
      $region73: #{bam_forward.1} parent=71 // pred_check
        %p2353 = pneg %p322
      $region74: #{bam_forward.1} parent=71 // pred_check_branch
        %2355 = sbr.rel (%p2353) target = $region76
      $region75: #{bam_forward.1} parent=71 // pred_region
        _
      $region76: #{bam_forward.1} parent=71 // pred_fallthru
        _
    $region72: #{bam_forward.1} parent=5 // pred_fallthru
      _
    %p2356 = scmp.le.s32.totalorder 2, %s21
    // Predicated region
    $region77: #{bam_forward.1} parent=5 // pred_check
      %p2357 = pneg %p2356
    $region78: #{bam_forward.1} parent=5 // pred_check_branch
      %2359 = sbr.rel (%p2357) target = $region80
    $region79: #{bam_forward.1} parent=5 // pred_region
      %s2360 = ssub.s32 %s21, 2
      // Predicated region
      $region81: #{bam_forward.1} parent=79 // pred_check
        %p2361 = pneg %p328
      $region82: #{bam_forward.1} parent=79 // pred_check_branch
        %2363 = sbr.rel (%p2361) target = $region84
      $region83: #{bam_forward.1} parent=79 // pred_region
        %p2364 = scmp.lt.s32.totalorder %s27, 1
        %s2365 = scalar_select %p2364, %s27, 1
        %s2366 = smul.addr %s2365, 16
        %s2367 = smul.addr %s2366, 8
        %s2368 = scalar_lea.vmem %s13, %s2367
      $region84: #{bam_forward.1} parent=79 // pred_fallthru
        _
    $region80: #{bam_forward.1} parent=5 // pred_fallthru
      _
  $region6: #{bam_forward.1} parent=0 // loop_footer
    %s25 = sadd.s32 1, %s21
  $region7: #{bam_forward.1} parent=0 // loop_footer_branch
    %20 = sbr.rel target = $region3
  $region8: #{bam_forward.1} parent=0 // loop_exit
    _

</llo_original>
